<compile_context>
chip_gen: v6e
topology: v6e:2x2x1
jax: 0.10.0
libtpu: 0.0.40
codegen_flags: <defaults>
</compile_context>

<pallas_src>
import math
import functools

import jax
import jax.numpy as jnp
from jax.experimental import pallas as pl
from jax.experimental.pallas import tpu as pltpu

LN_EPS = 1e-12
MASK_FILL = -1e9


# -----------------------------------------------------------------------------
# Pallas kernels
# -----------------------------------------------------------------------------
def _mha_ln_kernel(n_heads,
                   xq_ref, xkv_ref, m_ref,
                   wq_ref, bq_ref, wkv_ref, bkv_ref, wo_ref, bo_ref,
                   g_ref, b_ref, o_ref):
    """Fused MHA + out-proj + residual + LayerNorm for one batch element."""
    xq = xq_ref[0]            # (Lq, D)  f32
    xkv = xkv_ref[0]          # (Lk, D)  f32
    m = m_ref[0]              # (Lq, Lk) f32 (1.0 = keep)
    D = xq.shape[-1]
    dh = D // n_heads
    scale = 1.0 / math.sqrt(dh)

    # fused projections (weights already bf16)
    q = jnp.dot(xq.astype(jnp.bfloat16), wq_ref[...],
                preferred_element_type=jnp.float32) + bq_ref[...]
    kv = jnp.dot(xkv.astype(jnp.bfloat16), wkv_ref[...],
                 preferred_element_type=jnp.float32) + bkv_ref[...]
    k = kv[:, :D]
    v = kv[:, D:]

    # fold 1/sqrt(dh) into q (smaller than the score matrix)
    q = q * scale

    # per-head attention (static unrolled loop, everything stays in VMEM)
    ctx_parts = []
    for h in range(n_heads):
        sl = slice(h * dh, (h + 1) * dh)
        qh = q[:, sl].astype(jnp.bfloat16)          # (Lq, dh)
        kh_t = k[:, sl].T.astype(jnp.bfloat16)      # (dh, Lk)
        vh = v[:, sl].astype(jnp.bfloat16)          # (Lk, dh)
        s = jnp.dot(qh, kh_t, preferred_element_type=jnp.float32)
        s = jnp.where(m > 0.0, s, MASK_FILL)
        s = s - jnp.max(s, axis=-1, keepdims=True)
        p = jnp.exp(s)
        p = p * pl.reciprocal(jnp.sum(p, axis=-1, keepdims=True), approx=True)
        ctx_parts.append(jnp.dot(p.astype(jnp.bfloat16), vh,
                                 preferred_element_type=jnp.float32))
    ctx = jnp.concatenate(ctx_parts, axis=-1)       # (Lq, D)

    # out-projection + residual + LayerNorm epilogue (f32)
    out = jnp.dot(ctx.astype(jnp.bfloat16), wo_ref[...],
                  preferred_element_type=jnp.float32) + bo_ref[...]
    y = out + xq
    mean = jnp.mean(y, axis=-1, keepdims=True)
    var = jnp.mean((y - mean) ** 2, axis=-1, keepdims=True)
    yn = (y - mean) * jax.lax.rsqrt(var + LN_EPS)
    o_ref[0] = yn * g_ref[...] + b_ref[...]


def mha_ln_pallas(x_q, x_kv, mask, p, ln_g, ln_b, n_heads):
    """x_q: (B,Lq,D), x_kv: (B,Lk,D), mask: (B,Lq,Lk) -> LN(attn(x_q,x_kv)+x_q)."""
    B, Lq, D = x_q.shape
    Lk = x_kv.shape[1]
    kernel = functools.partial(_mha_ln_kernel, n_heads)
    return pl.pallas_call(
        kernel,
        out_shape=jax.ShapeDtypeStruct((B, Lq, D), jnp.float32),
        grid=(B,),
        in_specs=[
            pl.BlockSpec((1, Lq, D), lambda b: (b, 0, 0)),
            pl.BlockSpec((1, Lk, D), lambda b: (b, 0, 0)),
            pl.BlockSpec((1, Lq, Lk), lambda b: (b, 0, 0)),
            pl.BlockSpec((D, D), lambda b: (0, 0)),
            pl.BlockSpec((1, D), lambda b: (0, 0)),
            pl.BlockSpec((D, 2 * D), lambda b: (0, 0)),
            pl.BlockSpec((1, 2 * D), lambda b: (0, 0)),
            pl.BlockSpec((D, D), lambda b: (0, 0)),
            pl.BlockSpec((1, D), lambda b: (0, 0)),
            pl.BlockSpec((1, D), lambda b: (0, 0)),
            pl.BlockSpec((1, D), lambda b: (0, 0)),
        ],
        out_specs=pl.BlockSpec((1, Lq, D), lambda b: (b, 0, 0)),
        compiler_params=pltpu.CompilerParams(
            dimension_semantics=("parallel",)),
    )(x_q, x_kv, mask,
      p["wq"], p["bq"], p["wkv"], p["bkv"], p["wo"], p["bo"],
      ln_g, ln_b)


def _ffn_ln_kernel(x_ref, w1_ref, b1_ref, w2_ref, b2_ref, g_ref, bb_ref, o_ref):
    """Fused FFN (w1+ReLU -> w2) + residual + LayerNorm for one batch element."""
    x = x_ref[0]                                    # (L, D) f32
    h = jnp.dot(x.astype(jnp.bfloat16), w1_ref[...],
                preferred_element_type=jnp.float32) + b1_ref[...]
    h = jnp.maximum(h, 0.0)
    y = jnp.dot(h.astype(jnp.bfloat16), w2_ref[...],
                preferred_element_type=jnp.float32) + b2_ref[...]
    y = y + x
    mean = jnp.mean(y, axis=-1, keepdims=True)
    var = jnp.mean((y - mean) ** 2, axis=-1, keepdims=True)
    yn = (y - mean) * jax.lax.rsqrt(var + LN_EPS)
    o_ref[0] = yn * g_ref[...] + bb_ref[...]


def ffn_ln_pallas(x, p, ln_g, ln_b):
    B, L, D = x.shape
    Hf = p["w1"].shape[1]
    return pl.pallas_call(
        _ffn_ln_kernel,
        out_shape=jax.ShapeDtypeStruct((B, L, D), jnp.float32),
        grid=(B,),
        in_specs=[
            pl.BlockSpec((1, L, D), lambda b: (b, 0, 0)),
            pl.BlockSpec((D, Hf), lambda b: (0, 0)),
            pl.BlockSpec((1, Hf), lambda b: (0, 0)),
            pl.BlockSpec((Hf, D), lambda b: (0, 0)),
            pl.BlockSpec((1, D), lambda b: (0, 0)),
            pl.BlockSpec((1, D), lambda b: (0, 0)),
            pl.BlockSpec((1, D), lambda b: (0, 0)),
        ],
        out_specs=pl.BlockSpec((1, L, D), lambda b: (b, 0, 0)),
        compiler_params=pltpu.CompilerParams(
            dimension_semantics=("parallel",)),
    )(x, p["w1"], p["b1"], p["w2"], p["b2"], ln_g, ln_b)


def _linear_kernel(x_ref, w_ref, b_ref, o_ref):
    o_ref[...] = jnp.dot(x_ref[...].astype(jnp.bfloat16), w_ref[...],
                         preferred_element_type=jnp.float32) + b_ref[...]


def linear_pallas(x2d, w, b):
    """x2d: (M, K) f32, w: (K, N) bf16, b: (1, N) f32 -> (M, N) f32.
    M-tiled (parallel) so v7x's two TensorCores can split rows.
    # TODO(synk): tile K/N with an f32 accumulator when scaling to large vocab
    # (v7x has only 64 MiB VMEM; whole-array weight blocks break there first).
    """
    M, K = x2d.shape
    N = w.shape[1]
    tm = 256 if (M > 256 and M % 256 == 0) else M
    return pl.pallas_call(
        _linear_kernel,
        out_shape=jax.ShapeDtypeStruct((M, N), jnp.float32),
        grid=(M // tm,),
        in_specs=[
            pl.BlockSpec((tm, K), lambda i: (i, 0)),
            pl.BlockSpec((K, N), lambda i: (0, 0)),
            pl.BlockSpec((1, N), lambda i: (0, 0)),
        ],
        out_specs=pl.BlockSpec((tm, N), lambda i: (i, 0)),
        compiler_params=pltpu.CompilerParams(
            dimension_semantics=("parallel",)),
    )(x2d, w, b)


# -----------------------------------------------------------------------------
# Plain-JAX glue (embedding, positional encoding, masks)
# -----------------------------------------------------------------------------
def sinusoidal_pe(max_len, d_model):
    pos = jnp.arange(max_len, dtype=jnp.float32)[:, None]
    i = jnp.arange(d_model, dtype=jnp.float32)[None, :]
    angle = pos / jnp.power(10000.0, (2.0 * jnp.floor(i / 2.0)) / d_model)
    pe = jnp.where(jnp.arange(d_model)[None, :] % 2 == 0,
                   jnp.sin(angle), jnp.cos(angle))
    return pe


def embed(tokens, emb_table, pe):
    L = tokens.shape[1]
    return jnp.take(emb_table, tokens, axis=0) + pe[None, :L, :]


def make_pad_mask(q_tok, k_tok, pad_q, pad_k):
    qm = (q_tok != pad_q)[:, :, None]
    km = (k_tok != pad_k)[:, None, :]
    return (qm & km).astype(jnp.float32)


def make_causal_mask(L):
    return jnp.tril(jnp.ones((L, L), jnp.float32))


# -----------------------------------------------------------------------------
# Model forward
# -----------------------------------------------------------------------------
def transformer_forward(src, trg, params, cfg):
    n_heads = cfg["n_heads"]
    src_mask = make_pad_mask(src, src, cfg["src_pad_idx"], cfg["src_pad_idx"])
    trg_mask = make_pad_mask(trg, trg, cfg["trg_pad_idx"], cfg["trg_pad_idx"]) \
               * make_causal_mask(trg.shape[1])[None, :, :]
    src_trg_mask = make_pad_mask(trg, src, cfg["trg_pad_idx"], cfg["src_pad_idx"])

    # encoder: per layer -> fused (attn+res+LN), fused (FFN+res+LN)
    x = embed(src, params["enc_emb"], params["pe"])
    for lp in params["enc_layers"]:
        x = mha_ln_pallas(x, x, src_mask, lp["attn"], lp["ln1_g"], lp["ln1_b"], n_heads)
        x = ffn_ln_pallas(x, lp["ffn"], lp["ln2_g"], lp["ln2_b"])
    enc = x

    # decoder
    y = embed(trg, params["dec_emb"], params["pe"])
    for lp in params["dec_layers"]:
        y = mha_ln_pallas(y, y, trg_mask, lp["attn1"], lp["ln1_g"], lp["ln1_b"], n_heads)
        y = mha_ln_pallas(y, enc, src_trg_mask, lp["cross"], lp["ln2_g"], lp["ln2_b"], n_heads)
        y = ffn_ln_pallas(y, lp["ffn"], lp["ln3_g"], lp["ln3_b"])

    # final vocab projection (vocab padded to a lane-dense multiple of 128)
    B, Lt, D = y.shape
    out = linear_pallas(y.reshape(B * Lt, D), params["fc_w_pad"], params["fc_b_pad"])
    V = cfg["dec_voc_size"]
    return out[:, :V].reshape(B, Lt, V)


# -----------------------------------------------------------------------------
# Deterministic parameter init
# -----------------------------------------------------------------------------
def _init_w(key, fan_in, fan_out):
    return jax.random.normal(key, (fan_in, fan_out), jnp.float32) * 0.02


def _init_mha(key, d_model):
    ks = jax.random.split(key, 4)
    wq = _init_w(ks[0], d_model, d_model)
    wk = _init_w(ks[1], d_model, d_model)
    wv = _init_w(ks[2], d_model, d_model)
    wo = _init_w(ks[3], d_model, d_model)
    return {
        "wq": wq.astype(jnp.bfloat16),
        "bq": jnp.zeros((1, d_model), jnp.float32),
        "wkv": jnp.concatenate([wk, wv], axis=1).astype(jnp.bfloat16),
        "bkv": jnp.zeros((1, 2 * d_model), jnp.float32),
        "wo": wo.astype(jnp.bfloat16),
        "bo": jnp.zeros((1, d_model), jnp.float32),
    }


def _init_ffn(key, d_model, hidden):
    k1, k2 = jax.random.split(key)
    return {
        "w1": _init_w(k1, d_model, hidden).astype(jnp.bfloat16),
        "b1": jnp.zeros((1, hidden), jnp.float32),
        "w2": _init_w(k2, hidden, d_model).astype(jnp.bfloat16),
        "b2": jnp.zeros((1, d_model), jnp.float32),
    }


def init_params(key, cfg):
    d = cfg["d_model"]
    V = cfg["dec_voc_size"]
    Vpad = ((V + 127) // 128) * 128
    keys = jax.random.split(key, 4 + 2 * cfg["n_layer"])

    fc_w = _init_w(keys[2], d, V)
    fc_w_pad = jnp.zeros((d, Vpad), jnp.float32).at[:, :V].set(fc_w)

    params = {
        "enc_emb": jax.random.normal(keys[0], (cfg["enc_voc_size"], d), jnp.float32) * 0.02,
        "dec_emb": jax.random.normal(keys[1], (cfg["dec_voc_size"], d), jnp.float32) * 0.02,
        "pe": sinusoidal_pe(cfg["max_len"], d),
        "fc_w_pad": fc_w_pad.astype(jnp.bfloat16),
        "fc_b_pad": jnp.zeros((1, Vpad), jnp.float32),
        "enc_layers": [],
        "dec_layers": [],
    }
    for li in range(cfg["n_layer"]):
        ek = jax.random.split(keys[3 + li], 2)
        params["enc_layers"].append({
            "attn": _init_mha(ek[0], d),
            "ln1_g": jnp.ones((1, d), jnp.float32), "ln1_b": jnp.zeros((1, d), jnp.float32),
            "ffn": _init_ffn(ek[1], d, cfg["ffn_hidden"]),
            "ln2_g": jnp.ones((1, d), jnp.float32), "ln2_b": jnp.zeros((1, d), jnp.float32),
        })
    for li in range(cfg["n_layer"]):
        dk = jax.random.split(keys[3 + cfg["n_layer"] + li], 3)
        params["dec_layers"].append({
            "attn1": _init_mha(dk[0], d),
            "ln1_g": jnp.ones((1, d), jnp.float32), "ln1_b": jnp.zeros((1, d), jnp.float32),
            "cross": _init_mha(dk[1], d),
            "ln2_g": jnp.ones((1, d), jnp.float32), "ln2_b": jnp.zeros((1, d), jnp.float32),
            "ffn": _init_ffn(dk[2], d, cfg["ffn_hidden"]),
            "ln3_g": jnp.ones((1, d), jnp.float32), "ln3_b": jnp.zeros((1, d), jnp.float32),
        })
    return params


# -----------------------------------------------------------------------------
if __name__ == "__main__":
    cfg = dict(
        src_pad_idx=0, trg_pad_idx=0,
        enc_voc_size=50, dec_voc_size=48,
        max_len=16, d_model=32, n_heads=4, ffn_hidden=64, n_layer=2,
        drop_p=0.0,  # dropout is identity in eval / p=0
    )
    key = jax.random.PRNGKey(0)
    kp, ks, kt = jax.random.split(key, 3)
    params = init_params(kp, cfg)

    B, Ls, Lt = 2, 8, 8
    src = jax.random.randint(ks, (B, Ls), 1, cfg["enc_voc_size"], dtype=jnp.int32)
    trg = jax.random.randint(kt, (B, Lt), 1, cfg["dec_voc_size"], dtype=jnp.int32)
    # add a couple of pad tokens so the pad masks are exercised
    src = src.at[0, -2:].set(cfg["src_pad_idx"])
    trg = trg.at[1, -1:].set(cfg["trg_pad_idx"])

    fwd = jax.jit(lambda s, t: transformer_forward(s, t, params, cfg))
    out = fwd(src, trg)
    jax.block_until_ready(out)
    assert out.shape == (B, Lt, cfg["dec_voc_size"]), out.shape
    assert bool(jnp.all(jnp.isfinite(out)))
    print("KERNEL_OK")
</pallas_src>

<mosaic_0001>
module attributes {stable_mosaic.version = 11 : i64} {
  func.func @_ffn_ln_kernel(%arg0: i32, %arg1: memref<1x8x32xf32, #tpu.memory_space<vmem>>, %arg2: memref<32x64xbf16, #tpu.memory_space<vmem>>, %arg3: memref<1x64xf32, #tpu.memory_space<vmem>>, %arg4: memref<64x32xbf16, #tpu.memory_space<vmem>>, %arg5: memref<1x32xf32, #tpu.memory_space<vmem>>, %arg6: memref<1x32xf32, #tpu.memory_space<vmem>>, %arg7: memref<1x32xf32, #tpu.memory_space<vmem>>, %arg8: memref<1x8x32xf32, #tpu.memory_space<vmem>>) attributes {dimension_semantics = [#tpu.dimension_semantics<parallel>], iteration_bounds = array<i64: 2>, scalar_prefetch = 0 : i64, scratch_operands = 0 : i64, tpu.core_type = #tpu.core_type<tc>, window_params = [{transform_indices = @transform_0, window_bounds = array<i64: 1, 8, 32>}, {pipeline_mode = #tpu.pipeline_mode<synchronous>, transform_indices = @transform_1, window_bounds = array<i64: 32, 64>}, {pipeline_mode = #tpu.pipeline_mode<synchronous>, transform_indices = @transform_2, window_bounds = array<i64: 1, 64>}, {pipeline_mode = #tpu.pipeline_mode<synchronous>, transform_indices = @transform_3, window_bounds = array<i64: 64, 32>}, {pipeline_mode = #tpu.pipeline_mode<synchronous>, transform_indices = @transform_4, window_bounds = array<i64: 1, 32>}, {pipeline_mode = #tpu.pipeline_mode<synchronous>, transform_indices = @transform_5, window_bounds = array<i64: 1, 32>}, {pipeline_mode = #tpu.pipeline_mode<synchronous>, transform_indices = @transform_6, window_bounds = array<i64: 1, 32>}, {transform_indices = @transform_7, window_bounds = array<i64: 1, 8, 32>}]} {
    %c0 = arith.constant 0 : index
    %c0_0 = arith.constant 0 : index
    %c0_1 = arith.constant 0 : index
    %0 = vector.load %arg1[%c0, %c0_0, %c0_1] : memref<1x8x32xf32, #tpu.memory_space<vmem>>, vector<1x8x32xf32>
    %1 = vector.shape_cast %0 : vector<1x8x32xf32> to vector<8x32xf32>
    %2 = arith.truncf %1 : vector<8x32xf32> to vector<8x32xbf16>
    %c0_2 = arith.constant 0 : index
    %c0_3 = arith.constant 0 : index
    %3 = vector.load %arg2[%c0_2, %c0_3] : memref<32x64xbf16, #tpu.memory_space<vmem>>, vector<32x64xbf16>
    %cst = arith.constant dense<0.000000e+00> : vector<8x64xf32>
    %4 = tpu.matmul %2, %3, %cst {dimension_numbers = #tpu.dot_dimension_numbers<[1], [0], [0], [1], [0, 0, 1, 1], [], []>} : vector<8x32xbf16>, vector<32x64xbf16>, vector<8x64xf32> -> vector<8x64xf32>
    %c0_4 = arith.constant 0 : index
    %c0_5 = arith.constant 0 : index
    %5 = vector.load %arg3[%c0_4, %c0_5] : memref<1x64xf32, #tpu.memory_space<vmem>>, vector<1x64xf32>
    %6 = vector.broadcast %5 : vector<1x64xf32> to vector<8x64xf32>
    %7 = arith.addf %4, %6 : vector<8x64xf32>
    %cst_6 = arith.constant 0.000000e+00 : f32
    %8 = vector.broadcast %cst_6 : f32 to vector<8x64xf32>
    %9 = arith.maximumf %7, %8 : vector<8x64xf32>
    %10 = arith.truncf %9 : vector<8x64xf32> to vector<8x64xbf16>
    %c0_7 = arith.constant 0 : index
    %c0_8 = arith.constant 0 : index
    %11 = vector.load %arg4[%c0_7, %c0_8] : memref<64x32xbf16, #tpu.memory_space<vmem>>, vector<64x32xbf16>
    %cst_9 = arith.constant dense<0.000000e+00> : vector<8x32xf32>
    %12 = tpu.matmul %10, %11, %cst_9 {dimension_numbers = #tpu.dot_dimension_numbers<[1], [0], [0], [1], [0, 0, 1, 1], [], []>} : vector<8x64xbf16>, vector<64x32xbf16>, vector<8x32xf32> -> vector<8x32xf32>
    %c0_10 = arith.constant 0 : index
    %c0_11 = arith.constant 0 : index
    %13 = vector.load %arg5[%c0_10, %c0_11] : memref<1x32xf32, #tpu.memory_space<vmem>>, vector<1x32xf32>
    %14 = vector.broadcast %13 : vector<1x32xf32> to vector<8x32xf32>
    %15 = arith.addf %12, %14 : vector<8x32xf32>
    %16 = arith.addf %15, %1 : vector<8x32xf32>
    %cst_12 = arith.constant dense<0.000000e+00> : vector<8xf32>
    %17 = vector.multi_reduction <add>, %16, %cst_12 [1] : vector<8x32xf32> to vector<8xf32>
    %18 = vector.shape_cast %17 : vector<8xf32> to vector<8x1xf32>
    %cst_13 = arith.constant 3.200000e+01 : f32
    %19 = vector.broadcast %cst_13 : f32 to vector<8x1xf32>
    %20 = arith.divf %18, %19 : vector<8x1xf32>
    %21 = vector.broadcast %20 : vector<8x1xf32> to vector<8x32xf32>
    %22 = arith.subf %16, %21 : vector<8x32xf32>
    %23 = arith.mulf %22, %22 : vector<8x32xf32>
    %cst_14 = arith.constant dense<0.000000e+00> : vector<8xf32>
    %24 = vector.multi_reduction <add>, %23, %cst_14 [1] : vector<8x32xf32> to vector<8xf32>
    %25 = vector.shape_cast %24 : vector<8xf32> to vector<8x1xf32>
    %cst_15 = arith.constant 3.200000e+01 : f32
    %26 = vector.broadcast %cst_15 : f32 to vector<8x1xf32>
    %27 = arith.divf %25, %26 : vector<8x1xf32>
    %28 = vector.broadcast %20 : vector<8x1xf32> to vector<8x32xf32>
    %29 = arith.subf %16, %28 : vector<8x32xf32>
    %cst_16 = arith.constant 9.99999996E-13 : f32
    %30 = vector.broadcast %cst_16 : f32 to vector<8x1xf32>
    %31 = arith.addf %27, %30 : vector<8x1xf32>
    %32 = math.rsqrt %31 : vector<8x1xf32>
    %33 = vector.broadcast %32 : vector<8x1xf32> to vector<8x32xf32>
    %34 = arith.mulf %29, %33 : vector<8x32xf32>
    %c0_17 = arith.constant 0 : index
    %c0_18 = arith.constant 0 : index
    %35 = vector.load %arg6[%c0_17, %c0_18] : memref<1x32xf32, #tpu.memory_space<vmem>>, vector<1x32xf32>
    %36 = vector.broadcast %35 : vector<1x32xf32> to vector<8x32xf32>
    %37 = arith.mulf %34, %36 : vector<8x32xf32>
    %c0_19 = arith.constant 0 : index
    %c0_20 = arith.constant 0 : index
    %38 = vector.load %arg7[%c0_19, %c0_20] : memref<1x32xf32, #tpu.memory_space<vmem>>, vector<1x32xf32>
    %39 = vector.broadcast %38 : vector<1x32xf32> to vector<8x32xf32>
    %40 = arith.addf %37, %39 : vector<8x32xf32>
    %c0_21 = arith.constant 0 : index
    %c0_22 = arith.constant 0 : index
    %c0_23 = arith.constant 0 : index
    %41 = vector.load %arg8[%c0_21, %c0_22, %c0_23] : memref<1x8x32xf32, #tpu.memory_space<vmem>>, vector<1x8x32xf32>
    %42 = vector.shape_cast %41 : vector<1x8x32xf32> to vector<8x32xf32>
    %43 = vector.shape_cast %40 : vector<8x32xf32> to vector<1x8x32xf32>
    tpu.vector_store %arg8[%c0_21, %c0_22, %c0_23], %43 {strides = array<i32>} : memref<1x8x32xf32, #tpu.memory_space<vmem>>, vector<1x8x32xf32>,
    return
  }
  func.func @transform_0(%arg0: i32) -> (i32, i32, i32) {
    %c0_i32 = arith.constant 0 : i32
    %c0_i32_0 = arith.constant 0 : i32
    %c0_i32_1 = arith.constant 0 : i32
    return %arg0, %c0_i32, %c0_i32_0 : i32, i32, i32
  }
  func.func @transform_1(%arg0: i32) -> (i32, i32) {
    %c0_i32 = arith.constant 0 : i32
    %c0_i32_0 = arith.constant 0 : i32
    %c0_i32_1 = arith.constant 0 : i32
    return %c0_i32, %c0_i32_0 : i32, i32
  }
  func.func @transform_2(%arg0: i32) -> (i32, i32) {
    %c0_i32 = arith.constant 0 : i32
    %c0_i32_0 = arith.constant 0 : i32
    %c0_i32_1 = arith.constant 0 : i32
    return %c0_i32, %c0_i32_0 : i32, i32
  }
  func.func @transform_3(%arg0: i32) -> (i32, i32) {
    %c0_i32 = arith.constant 0 : i32
    %c0_i32_0 = arith.constant 0 : i32
    %c0_i32_1 = arith.constant 0 : i32
    return %c0_i32, %c0_i32_0 : i32, i32
  }
  func.func @transform_4(%arg0: i32) -> (i32, i32) {
    %c0_i32 = arith.constant 0 : i32
    %c0_i32_0 = arith.constant 0 : i32
    %c0_i32_1 = arith.constant 0 : i32
    return %c0_i32, %c0_i32_0 : i32, i32
  }
  func.func @transform_5(%arg0: i32) -> (i32, i32) {
    %c0_i32 = arith.constant 0 : i32
    %c0_i32_0 = arith.constant 0 : i32
    %c0_i32_1 = arith.constant 0 : i32
    return %c0_i32, %c0_i32_0 : i32, i32
  }
  func.func @transform_6(%arg0: i32) -> (i32, i32) {
    %c0_i32 = arith.constant 0 : i32
    %c0_i32_0 = arith.constant 0 : i32
    %c0_i32_1 = arith.constant 0 : i32
    return %c0_i32, %c0_i32_0 : i32, i32
  }
  func.func @transform_7(%arg0: i32) -> (i32, i32, i32) {
    %c0_i32 = arith.constant 0 : i32
    %c0_i32_0 = arith.constant 0 : i32
    %c0_i32_1 = arith.constant 0 : i32
    return %arg0, %c0_i32, %c0_i32_0 : i32, i32, i32
  }
}

module attributes {stable_mosaic.version = 11 : i64} {
  func.func @_mha_ln_kernel(%arg0: i32, %arg1: memref<1x8x32xf32, #tpu.memory_space<vmem>>, %arg2: memref<1x8x32xf32, #tpu.memory_space<vmem>>, %arg3: memref<1x8x8xf32, #tpu.memory_space<vmem>>, %arg4: memref<32x32xbf16, #tpu.memory_space<vmem>>, %arg5: memref<1x32xf32, #tpu.memory_space<vmem>>, %arg6: memref<32x64xbf16, #tpu.memory_space<vmem>>, %arg7: memref<1x64xf32, #tpu.memory_space<vmem>>, %arg8: memref<32x32xbf16, #tpu.memory_space<vmem>>, %arg9: memref<1x32xf32, #tpu.memory_space<vmem>>, %arg10: memref<1x32xf32, #tpu.memory_space<vmem>>, %arg11: memref<1x32xf32, #tpu.memory_space<vmem>>, %arg12: memref<1x8x32xf32, #tpu.memory_space<vmem>>) attributes {dimension_semantics = [#tpu.dimension_semantics<parallel>], iteration_bounds = array<i64: 2>, scalar_prefetch = 0 : i64, scratch_operands = 0 : i64, tpu.core_type = #tpu.core_type<tc>, window_params = [{transform_indices = @transform_0, window_bounds = array<i64: 1, 8, 32>}, {transform_indices = @transform_1, window_bounds = array<i64: 1, 8, 32>}, {transform_indices = @transform_2, window_bounds = array<i64: 1, 8, 8>}, {pipeline_mode = #tpu.pipeline_mode<synchronous>, transform_indices = @transform_3, window_bounds = array<i64: 32, 32>}, {pipeline_mode = #tpu.pipeline_mode<synchronous>, transform_indices = @transform_4, window_bounds = array<i64: 1, 32>}, {pipeline_mode = #tpu.pipeline_mode<synchronous>, transform_indices = @transform_5, window_bounds = array<i64: 32, 64>}, {pipeline_mode = #tpu.pipeline_mode<synchronous>, transform_indices = @transform_6, window_bounds = array<i64: 1, 64>}, {pipeline_mode = #tpu.pipeline_mode<synchronous>, transform_indices = @transform_7, window_bounds = array<i64: 32, 32>}, {pipeline_mode = #tpu.pipeline_mode<synchronous>, transform_indices = @transform_8, window_bounds = array<i64: 1, 32>}, {pipeline_mode = #tpu.pipeline_mode<synchronous>, transform_indices = @transform_9, window_bounds = array<i64: 1, 32>}, {pipeline_mode = #tpu.pipeline_mode<synchronous>, transform_indices = @transform_10, window_bounds = array<i64: 1, 32>}, {transform_indices = @transform_11, window_bounds = array<i64: 1, 8, 32>}]} {
    %c0 = arith.constant 0 : index
    %c0_0 = arith.constant 0 : index
    %c0_1 = arith.constant 0 : index
    %0 = vector.load %arg1[%c0, %c0_0, %c0_1] : memref<1x8x32xf32, #tpu.memory_space<vmem>>, vector<1x8x32xf32>
    %1 = vector.shape_cast %0 : vector<1x8x32xf32> to vector<8x32xf32>
    %c0_2 = arith.constant 0 : index
    %c0_3 = arith.constant 0 : index
    %c0_4 = arith.constant 0 : index
    %2 = vector.load %arg2[%c0_2, %c0_3, %c0_4] : memref<1x8x32xf32, #tpu.memory_space<vmem>>, vector<1x8x32xf32>
    %3 = vector.shape_cast %2 : vector<1x8x32xf32> to vector<8x32xf32>
    %c0_5 = arith.constant 0 : index
    %c0_6 = arith.constant 0 : index
    %c0_7 = arith.constant 0 : index
    %4 = vector.load %arg3[%c0_5, %c0_6, %c0_7] : memref<1x8x8xf32, #tpu.memory_space<vmem>>, vector<1x8x8xf32>
    %5 = vector.shape_cast %4 : vector<1x8x8xf32> to vector<8x8xf32>
    %6 = arith.truncf %1 : vector<8x32xf32> to vector<8x32xbf16>
    %c0_8 = arith.constant 0 : index
    %c0_9 = arith.constant 0 : index
    %7 = vector.load %arg4[%c0_8, %c0_9] : memref<32x32xbf16, #tpu.memory_space<vmem>>, vector<32x32xbf16>
    %cst = arith.constant dense<0.000000e+00> : vector<8x32xf32>
    %8 = tpu.matmul %6, %7, %cst {dimension_numbers = #tpu.dot_dimension_numbers<[1], [0], [0], [1], [0, 0, 1, 1], [], []>} : vector<8x32xbf16>, vector<32x32xbf16>, vector<8x32xf32> -> vector<8x32xf32>
    %c0_10 = arith.constant 0 : index
    %c0_11 = arith.constant 0 : index
    %9 = vector.load %arg5[%c0_10, %c0_11] : memref<1x32xf32, #tpu.memory_space<vmem>>, vector<1x32xf32>
    %10 = vector.broadcast %9 : vector<1x32xf32> to vector<8x32xf32>
    %11 = arith.addf %8, %10 : vector<8x32xf32>
    %12 = arith.truncf %3 : vector<8x32xf32> to vector<8x32xbf16>
    %c0_12 = arith.constant 0 : index
    %c0_13 = arith.constant 0 : index
    %13 = vector.load %arg6[%c0_12, %c0_13] : memref<32x64xbf16, #tpu.memory_space<vmem>>, vector<32x64xbf16>
    %cst_14 = arith.constant dense<0.000000e+00> : vector<8x64xf32>
    %14 = tpu.matmul %12, %13, %cst_14 {dimension_numbers = #tpu.dot_dimension_numbers<[1], [0], [0], [1], [0, 0, 1, 1], [], []>} : vector<8x32xbf16>, vector<32x64xbf16>, vector<8x64xf32> -> vector<8x64xf32>
    %c0_15 = arith.constant 0 : index
    %c0_16 = arith.constant 0 : index
    %15 = vector.load %arg7[%c0_15, %c0_16] : memref<1x64xf32, #tpu.memory_space<vmem>>, vector<1x64xf32>
    %16 = vector.broadcast %15 : vector<1x64xf32> to vector<8x64xf32>
    %17 = arith.addf %14, %16 : vector<8x64xf32>
    %18 = vector.extract_strided_slice %17 {offsets = [0, 0], sizes = [8, 32], strides = [1, 1]} : vector<8x64xf32> to vector<8x32xf32>
    %19 = vector.extract_strided_slice %17 {offsets = [0, 32], sizes = [8, 32], strides = [1, 1]} : vector<8x64xf32> to vector<8x32xf32>
    %cst_17 = arith.constant 0.353553385 : f32
    %20 = vector.broadcast %cst_17 : f32 to vector<8x32xf32>
    %21 = arith.mulf %11, %20 : vector<8x32xf32>
    %22 = vector.extract_strided_slice %21 {offsets = [0, 0], sizes = [8, 8], strides = [1, 1]} : vector<8x32xf32> to vector<8x8xf32>
    %23 = arith.truncf %22 : vector<8x8xf32> to vector<8x8xbf16>
    %24 = vector.extract_strided_slice %18 {offsets = [0, 0], sizes = [8, 8], strides = [1, 1]} : vector<8x32xf32> to vector<8x8xf32>
    %25 = tpu.transpose %24, [1, 0] : vector<8x8xf32> -> vector<8x8xf32>
    %26 = arith.truncf %25 : vector<8x8xf32> to vector<8x8xbf16>
    %27 = vector.extract_strided_slice %19 {offsets = [0, 0], sizes = [8, 8], strides = [1, 1]} : vector<8x32xf32> to vector<8x8xf32>
    %28 = arith.truncf %27 : vector<8x8xf32> to vector<8x8xbf16>
    %cst_18 = arith.constant dense<0.000000e+00> : vector<8x8xf32>
    %29 = tpu.matmul %23, %26, %cst_18 {dimension_numbers = #tpu.dot_dimension_numbers<[1], [0], [0], [1], [0, 0, 1, 1], [], []>} : vector<8x8xbf16>, vector<8x8xbf16>, vector<8x8xf32> -> vector<8x8xf32>
    %cst_19 = arith.constant 0.000000e+00 : f32
    %30 = vector.broadcast %cst_19 : f32 to vector<8x8xf32>
    %31 = arith.cmpf ogt, %5, %30 : vector<8x8xf32>
    %cst_20 = arith.constant -1.000000e+09 : f32
    %32 = vector.broadcast %cst_20 : f32 to vector<8x8xf32>
    %33 = arith.select %31, %29, %32 : vector<8x8xi1>, vector<8x8xf32>
    %cst_21 = arith.constant dense<0xFF800000> : vector<8xf32>
    %34 = vector.multi_reduction <maximumf>, %33, %cst_21 [1] : vector<8x8xf32> to vector<8xf32>
    %35 = vector.shape_cast %34 : vector<8xf32> to vector<8x1xf32>
    %36 = vector.broadcast %35 : vector<8x1xf32> to vector<8x8xf32>
    %37 = arith.subf %33, %36 : vector<8x8xf32>
    %38 = math.exp %37 : vector<8x8xf32>
    %cst_22 = arith.constant dense<0.000000e+00> : vector<8xf32>
    %39 = vector.multi_reduction <add>, %38, %cst_22 [1] : vector<8x8xf32> to vector<8xf32>
    %40 = vector.shape_cast %39 : vector<8xf32> to vector<8x1xf32>
    %41 = tpu.reciprocal %40 {approx = true} : vector<8x1xf32> -> vector<8x1xf32>
    %42 = vector.broadcast %41 : vector<8x1xf32> to vector<8x8xf32>
    %43 = arith.mulf %38, %42 : vector<8x8xf32>
    %44 = arith.truncf %43 : vector<8x8xf32> to vector<8x8xbf16>
    %cst_23 = arith.constant dense<0.000000e+00> : vector<8x8xf32>
    %45 = tpu.matmul %44, %28, %cst_23 {dimension_numbers = #tpu.dot_dimension_numbers<[1], [0], [0], [1], [0, 0, 1, 1], [], []>} : vector<8x8xbf16>, vector<8x8xbf16>, vector<8x8xf32> -> vector<8x8xf32>
    %46 = vector.extract_strided_slice %21 {offsets = [0, 8], sizes = [8, 8], strides = [1, 1]} : vector<8x32xf32> to vector<8x8xf32>
    %47 = arith.truncf %46 : vector<8x8xf32> to vector<8x8xbf16>
    %48 = vector.extract_strided_slice %18 {offsets = [0, 8], sizes = [8, 8], strides = [1, 1]} : vector<8x32xf32> to vector<8x8xf32>
    %49 = tpu.transpose %48, [1, 0] : vector<8x8xf32> -> vector<8x8xf32>
    %50 = arith.truncf %49 : vector<8x8xf32> to vector<8x8xbf16>
    %51 = vector.extract_strided_slice %19 {offsets = [0, 8], sizes = [8, 8], strides = [1, 1]} : vector<8x32xf32> to vector<8x8xf32>
    %52 = arith.truncf %51 : vector<8x8xf32> to vector<8x8xbf16>
    %cst_24 = arith.constant dense<0.000000e+00> : vector<8x8xf32>
    %53 = tpu.matmul %47, %50, %cst_24 {dimension_numbers = #tpu.dot_dimension_numbers<[1], [0], [0], [1], [0, 0, 1, 1], [], []>} : vector<8x8xbf16>, vector<8x8xbf16>, vector<8x8xf32> -> vector<8x8xf32>
    %cst_25 = arith.constant 0.000000e+00 : f32
    %54 = vector.broadcast %cst_25 : f32 to vector<8x8xf32>
    %55 = arith.cmpf ogt, %5, %54 : vector<8x8xf32>
    %cst_26 = arith.constant -1.000000e+09 : f32
    %56 = vector.broadcast %cst_26 : f32 to vector<8x8xf32>
    %57 = arith.select %55, %53, %56 : vector<8x8xi1>, vector<8x8xf32>
    %cst_27 = arith.constant dense<0xFF800000> : vector<8xf32>
    %58 = vector.multi_reduction <maximumf>, %57, %cst_27 [1] : vector<8x8xf32> to vector<8xf32>
    %59 = vector.shape_cast %58 : vector<8xf32> to vector<8x1xf32>
    %60 = vector.broadcast %59 : vector<8x1xf32> to vector<8x8xf32>
    %61 = arith.subf %57, %60 : vector<8x8xf32>
    %62 = math.exp %61 : vector<8x8xf32>
    %cst_28 = arith.constant dense<0.000000e+00> : vector<8xf32>
    %63 = vector.multi_reduction <add>, %62, %cst_28 [1] : vector<8x8xf32> to vector<8xf32>
    %64 = vector.shape_cast %63 : vector<8xf32> to vector<8x1xf32>
    %65 = tpu.reciprocal %64 {approx = true} : vector<8x1xf32> -> vector<8x1xf32>
    %66 = vector.broadcast %65 : vector<8x1xf32> to vector<8x8xf32>
    %67 = arith.mulf %62, %66 : vector<8x8xf32>
    %68 = arith.truncf %67 : vector<8x8xf32> to vector<8x8xbf16>
    %cst_29 = arith.constant dense<0.000000e+00> : vector<8x8xf32>
    %69 = tpu.matmul %68, %52, %cst_29 {dimension_numbers = #tpu.dot_dimension_numbers<[1], [0], [0], [1], [0, 0, 1, 1], [], []>} : vector<8x8xbf16>, vector<8x8xbf16>, vector<8x8xf32> -> vector<8x8xf32>
    %70 = vector.extract_strided_slice %21 {offsets = [0, 16], sizes = [8, 8], strides = [1, 1]} : vector<8x32xf32> to vector<8x8xf32>
    %71 = arith.truncf %70 : vector<8x8xf32> to vector<8x8xbf16>
    %72 = vector.extract_strided_slice %18 {offsets = [0, 16], sizes = [8, 8], strides = [1, 1]} : vector<8x32xf32> to vector<8x8xf32>
    %73 = tpu.transpose %72, [1, 0] : vector<8x8xf32> -> vector<8x8xf32>
    %74 = arith.truncf %73 : vector<8x8xf32> to vector<8x8xbf16>
    %75 = vector.extract_strided_slice %19 {offsets = [0, 16], sizes = [8, 8], strides = [1, 1]} : vector<8x32xf32> to vector<8x8xf32>
    %76 = arith.truncf %75 : vector<8x8xf32> to vector<8x8xbf16>
    %cst_30 = arith.constant dense<0.000000e+00> : vector<8x8xf32>
    %77 = tpu.matmul %71, %74, %cst_30 {dimension_numbers = #tpu.dot_dimension_numbers<[1], [0], [0], [1], [0, 0, 1, 1], [], []>} : vector<8x8xbf16>, vector<8x8xbf16>, vector<8x8xf32> -> vector<8x8xf32>
    %cst_31 = arith.constant 0.000000e+00 : f32
    %78 = vector.broadcast %cst_31 : f32 to vector<8x8xf32>
    %79 = arith.cmpf ogt, %5, %78 : vector<8x8xf32>
    %cst_32 = arith.constant -1.000000e+09 : f32
    %80 = vector.broadcast %cst_32 : f32 to vector<8x8xf32>
    %81 = arith.select %79, %77, %80 : vector<8x8xi1>, vector<8x8xf32>
    %cst_33 = arith.constant dense<0xFF800000> : vector<8xf32>
    %82 = vector.multi_reduction <maximumf>, %81, %cst_33 [1] : vector<8x8xf32> to vector<8xf32>
    %83 = vector.shape_cast %82 : vector<8xf32> to vector<8x1xf32>
    %84 = vector.broadcast %83 : vector<8x1xf32> to vector<8x8xf32>
    %85 = arith.subf %81, %84 : vector<8x8xf32>
    %86 = math.exp %85 : vector<8x8xf32>
    %cst_34 = arith.constant dense<0.000000e+00> : vector<8xf32>
    %87 = vector.multi_reduction <add>, %86, %cst_34 [1] : vector<8x8xf32> to vector<8xf32>
    %88 = vector.shape_cast %87 : vector<8xf32> to vector<8x1xf32>
    %89 = tpu.reciprocal %88 {approx = true} : vector<8x1xf32> -> vector<8x1xf32>
    %90 = vector.broadcast %89 : vector<8x1xf32> to vector<8x8xf32>
    %91 = arith.mulf %86, %90 : vector<8x8xf32>
    %92 = arith.truncf %91 : vector<8x8xf32> to vector<8x8xbf16>
    %cst_35 = arith.constant dense<0.000000e+00> : vector<8x8xf32>
    %93 = tpu.matmul %92, %76, %cst_35 {dimension_numbers = #tpu.dot_dimension_numbers<[1], [0], [0], [1], [0, 0, 1, 1], [], []>} : vector<8x8xbf16>, vector<8x8xbf16>, vector<8x8xf32> -> vector<8x8xf32>
    %94 = vector.extract_strided_slice %21 {offsets = [0, 24], sizes = [8, 8], strides = [1, 1]} : vector<8x32xf32> to vector<8x8xf32>
    %95 = arith.truncf %94 : vector<8x8xf32> to vector<8x8xbf16>
    %96 = vector.extract_strided_slice %18 {offsets = [0, 24], sizes = [8, 8], strides = [1, 1]} : vector<8x32xf32> to vector<8x8xf32>
    %97 = tpu.transpose %96, [1, 0] : vector<8x8xf32> -> vector<8x8xf32>
    %98 = arith.truncf %97 : vector<8x8xf32> to vector<8x8xbf16>
    %99 = vector.extract_strided_slice %19 {offsets = [0, 24], sizes = [8, 8], strides = [1, 1]} : vector<8x32xf32> to vector<8x8xf32>
    %100 = arith.truncf %99 : vector<8x8xf32> to vector<8x8xbf16>
    %cst_36 = arith.constant dense<0.000000e+00> : vector<8x8xf32>
    %101 = tpu.matmul %95, %98, %cst_36 {dimension_numbers = #tpu.dot_dimension_numbers<[1], [0], [0], [1], [0, 0, 1, 1], [], []>} : vector<8x8xbf16>, vector<8x8xbf16>, vector<8x8xf32> -> vector<8x8xf32>
    %cst_37 = arith.constant 0.000000e+00 : f32
    %102 = vector.broadcast %cst_37 : f32 to vector<8x8xf32>
    %103 = arith.cmpf ogt, %5, %102 : vector<8x8xf32>
    %cst_38 = arith.constant -1.000000e+09 : f32
    %104 = vector.broadcast %cst_38 : f32 to vector<8x8xf32>
    %105 = arith.select %103, %101, %104 : vector<8x8xi1>, vector<8x8xf32>
    %cst_39 = arith.constant dense<0xFF800000> : vector<8xf32>
    %106 = vector.multi_reduction <maximumf>, %105, %cst_39 [1] : vector<8x8xf32> to vector<8xf32>
    %107 = vector.shape_cast %106 : vector<8xf32> to vector<8x1xf32>
    %108 = vector.broadcast %107 : vector<8x1xf32> to vector<8x8xf32>
    %109 = arith.subf %105, %108 : vector<8x8xf32>
    %110 = math.exp %109 : vector<8x8xf32>
    %cst_40 = arith.constant dense<0.000000e+00> : vector<8xf32>
    %111 = vector.multi_reduction <add>, %110, %cst_40 [1] : vector<8x8xf32> to vector<8xf32>
    %112 = vector.shape_cast %111 : vector<8xf32> to vector<8x1xf32>
    %113 = tpu.reciprocal %112 {approx = true} : vector<8x1xf32> -> vector<8x1xf32>
    %114 = vector.broadcast %113 : vector<8x1xf32> to vector<8x8xf32>
    %115 = arith.mulf %110, %114 : vector<8x8xf32>
    %116 = arith.truncf %115 : vector<8x8xf32> to vector<8x8xbf16>
    %cst_41 = arith.constant dense<0.000000e+00> : vector<8x8xf32>
    %117 = tpu.matmul %116, %100, %cst_41 {dimension_numbers = #tpu.dot_dimension_numbers<[1], [0], [0], [1], [0, 0, 1, 1], [], []>} : vector<8x8xbf16>, vector<8x8xbf16>, vector<8x8xf32> -> vector<8x8xf32>
    %118 = tpu.concatenate %45, %69, %93, %117 in 1 : vector<8x8xf32>, vector<8x8xf32>, vector<8x8xf32>, vector<8x8xf32> -> vector<8x32xf32>
    %119 = arith.truncf %118 : vector<8x32xf32> to vector<8x32xbf16>
    %c0_42 = arith.constant 0 : index
    %c0_43 = arith.constant 0 : index
    %120 = vector.load %arg8[%c0_42, %c0_43] : memref<32x32xbf16, #tpu.memory_space<vmem>>, vector<32x32xbf16>
    %cst_44 = arith.constant dense<0.000000e+00> : vector<8x32xf32>
    %121 = tpu.matmul %119, %120, %cst_44 {dimension_numbers = #tpu.dot_dimension_numbers<[1], [0], [0], [1], [0, 0, 1, 1], [], []>} : vector<8x32xbf16>, vector<32x32xbf16>, vector<8x32xf32> -> vector<8x32xf32>
    %c0_45 = arith.constant 0 : index
    %c0_46 = arith.constant 0 : index
    %122 = vector.load %arg9[%c0_45, %c0_46] : memref<1x32xf32, #tpu.memory_space<vmem>>, vector<1x32xf32>
    %123 = vector.broadcast %122 : vector<1x32xf32> to vector<8x32xf32>
    %124 = arith.addf %121, %123 : vector<8x32xf32>
    %125 = arith.addf %124, %1 : vector<8x32xf32>
    %cst_47 = arith.constant dense<0.000000e+00> : vector<8xf32>
    %126 = vector.multi_reduction <add>, %125, %cst_47 [1] : vector<8x32xf32> to vector<8xf32>
    %127 = vector.shape_cast %126 : vector<8xf32> to vector<8x1xf32>
    %cst_48 = arith.constant 3.200000e+01 : f32
    %128 = vector.broadcast %cst_48 : f32 to vector<8x1xf32>
    %129 = arith.divf %127, %128 : vector<8x1xf32>
    %130 = vector.broadcast %129 : vector<8x1xf32> to vector<8x32xf32>
    %131 = arith.subf %125, %130 : vector<8x32xf32>
    %132 = arith.mulf %131, %131 : vector<8x32xf32>
    %cst_49 = arith.constant dense<0.000000e+00> : vector<8xf32>
    %133 = vector.multi_reduction <add>, %132, %cst_49 [1] : vector<8x32xf32> to vector<8xf32>
    %134 = vector.shape_cast %133 : vector<8xf32> to vector<8x1xf32>
    %cst_50 = arith.constant 3.200000e+01 : f32
    %135 = vector.broadcast %cst_50 : f32 to vector<8x1xf32>
    %136 = arith.divf %134, %135 : vector<8x1xf32>
    %137 = vector.broadcast %129 : vector<8x1xf32> to vector<8x32xf32>
    %138 = arith.subf %125, %137 : vector<8x32xf32>
    %cst_51 = arith.constant 9.99999996E-13 : f32
    %139 = vector.broadcast %cst_51 : f32 to vector<8x1xf32>
    %140 = arith.addf %136, %139 : vector<8x1xf32>
    %141 = math.rsqrt %140 : vector<8x1xf32>
    %142 = vector.broadcast %141 : vector<8x1xf32> to vector<8x32xf32>
    %143 = arith.mulf %138, %142 : vector<8x32xf32>
    %c0_52 = arith.constant 0 : index
    %c0_53 = arith.constant 0 : index
    %144 = vector.load %arg10[%c0_52, %c0_53] : memref<1x32xf32, #tpu.memory_space<vmem>>, vector<1x32xf32>
    %145 = vector.broadcast %144 : vector<1x32xf32> to vector<8x32xf32>
    %146 = arith.mulf %143, %145 : vector<8x32xf32>
    %c0_54 = arith.constant 0 : index
    %c0_55 = arith.constant 0 : index
    %147 = vector.load %arg11[%c0_54, %c0_55] : memref<1x32xf32, #tpu.memory_space<vmem>>, vector<1x32xf32>
    %148 = vector.broadcast %147 : vector<1x32xf32> to vector<8x32xf32>
    %149 = arith.addf %146, %148 : vector<8x32xf32>
    %c0_56 = arith.constant 0 : index
    %c0_57 = arith.constant 0 : index
    %c0_58 = arith.constant 0 : index
    %150 = vector.load %arg12[%c0_56, %c0_57, %c0_58] : memref<1x8x32xf32, #tpu.memory_space<vmem>>, vector<1x8x32xf32>
    %151 = vector.shape_cast %150 : vector<1x8x32xf32> to vector<8x32xf32>
    %152 = vector.shape_cast %149 : vector<8x32xf32> to vector<1x8x32xf32>
    tpu.vector_store %arg12[%c0_56, %c0_57, %c0_58], %152 {strides = array<i32>} : memref<1x8x32xf32, #tpu.memory_space<vmem>>, vector<1x8x32xf32>,
    return
  }
  func.func @transform_0(%arg0: i32) -> (i32, i32, i32) {
    %c0_i32 = arith.constant 0 : i32
    %c0_i32_0 = arith.constant 0 : i32
    %c0_i32_1 = arith.constant 0 : i32
    return %arg0, %c0_i32, %c0_i32_0 : i32, i32, i32
  }
  func.func @transform_1(%arg0: i32) -> (i32, i32, i32) {
    %c0_i32 = arith.constant 0 : i32
    %c0_i32_0 = arith.constant 0 : i32
    %c0_i32_1 = arith.constant 0 : i32
    return %arg0, %c0_i32, %c0_i32_0 : i32, i32, i32
  }
  func.func @transform_2(%arg0: i32) -> (i32, i32, i32) {
    %c0_i32 = arith.constant 0 : i32
    %c0_i32_0 = arith.constant 0 : i32
    %c0_i32_1 = arith.constant 0 : i32
    return %arg0, %c0_i32, %c0_i32_0 : i32, i32, i32
  }
  func.func @transform_3(%arg0: i32) -> (i32, i32) {
    %c0_i32 = arith.constant 0 : i32
    %c0_i32_0 = arith.constant 0 : i32
    %c0_i32_1 = arith.constant 0 : i32
    return %c0_i32, %c0_i32_0 : i32, i32
  }
  func.func @transform_4(%arg0: i32) -> (i32, i32) {
    %c0_i32 = arith.constant 0 : i32
    %c0_i32_0 = arith.constant 0 : i32
    %c0_i32_1 = arith.constant 0 : i32
    return %c0_i32, %c0_i32_0 : i32, i32
  }
  func.func @transform_5(%arg0: i32) -> (i32, i32) {
    %c0_i32 = arith.constant 0 : i32
    %c0_i32_0 = arith.constant 0 : i32
    %c0_i32_1 = arith.constant 0 : i32
    return %c0_i32, %c0_i32_0 : i32, i32
  }
  func.func @transform_6(%arg0: i32) -> (i32, i32) {
    %c0_i32 = arith.constant 0 : i32
    %c0_i32_0 = arith.constant 0 : i32
    %c0_i32_1 = arith.constant 0 : i32
    return %c0_i32, %c0_i32_0 : i32, i32
  }
  func.func @transform_7(%arg0: i32) -> (i32, i32) {
    %c0_i32 = arith.constant 0 : i32
    %c0_i32_0 = arith.constant 0 : i32
    %c0_i32_1 = arith.constant 0 : i32
    return %c0_i32, %c0_i32_0 : i32, i32
  }
  func.func @transform_8(%arg0: i32) -> (i32, i32) {
    %c0_i32 = arith.constant 0 : i32
    %c0_i32_0 = arith.constant 0 : i32
    %c0_i32_1 = arith.constant 0 : i32
    return %c0_i32, %c0_i32_0 : i32, i32
  }
  func.func @transform_9(%arg0: i32) -> (i32, i32) {
    %c0_i32 = arith.constant 0 : i32
    %c0_i32_0 = arith.constant 0 : i32
    %c0_i32_1 = arith.constant 0 : i32
    return %c0_i32, %c0_i32_0 : i32, i32
  }
  func.func @transform_10(%arg0: i32) -> (i32, i32) {
    %c0_i32 = arith.constant 0 : i32
    %c0_i32_0 = arith.constant 0 : i32
    %c0_i32_1 = arith.constant 0 : i32
    return %c0_i32, %c0_i32_0 : i32, i32
  }
  func.func @transform_11(%arg0: i32) -> (i32, i32, i32) {
    %c0_i32 = arith.constant 0 : i32
    %c0_i32_0 = arith.constant 0 : i32
    %c0_i32_1 = arith.constant 0 : i32
    return %arg0, %c0_i32, %c0_i32_0 : i32, i32, i32
  }
}

module attributes {stable_mosaic.version = 11 : i64} {
  func.func @_linear_kernel(%arg0: i32, %arg1: memref<16x32xf32, #tpu.memory_space<vmem>>, %arg2: memref<32x128xbf16, #tpu.memory_space<vmem>>, %arg3: memref<1x128xf32, #tpu.memory_space<vmem>>, %arg4: memref<16x128xf32, #tpu.memory_space<vmem>>) attributes {dimension_semantics = [#tpu.dimension_semantics<parallel>], iteration_bounds = array<i64: 1>, scalar_prefetch = 0 : i64, scratch_operands = 0 : i64, tpu.core_type = #tpu.core_type<tc>, window_params = [{transform_indices = @transform_0, window_bounds = array<i64: 16, 32>}, {pipeline_mode = #tpu.pipeline_mode<synchronous>, transform_indices = @transform_1, window_bounds = array<i64: 32, 128>}, {pipeline_mode = #tpu.pipeline_mode<synchronous>, transform_indices = @transform_2, window_bounds = array<i64: 1, 128>}, {transform_indices = @transform_3, window_bounds = array<i64: 16, 128>}]} {
    %c0 = arith.constant 0 : index
    %c0_0 = arith.constant 0 : index
    %0 = vector.load %arg1[%c0, %c0_0] : memref<16x32xf32, #tpu.memory_space<vmem>>, vector<16x32xf32>
    %1 = arith.truncf %0 : vector<16x32xf32> to vector<16x32xbf16>
    %c0_1 = arith.constant 0 : index
    %c0_2 = arith.constant 0 : index
    %2 = vector.load %arg2[%c0_1, %c0_2] : memref<32x128xbf16, #tpu.memory_space<vmem>>, vector<32x128xbf16>
    %cst = arith.constant dense<0.000000e+00> : vector<16x128xf32>
    %3 = tpu.matmul %1, %2, %cst {dimension_numbers = #tpu.dot_dimension_numbers<[1], [0], [0], [1], [0, 0, 1, 1], [], []>} : vector<16x32xbf16>, vector<32x128xbf16>, vector<16x128xf32> -> vector<16x128xf32>
    %c0_3 = arith.constant 0 : index
    %c0_4 = arith.constant 0 : index
    %4 = vector.load %arg3[%c0_3, %c0_4] : memref<1x128xf32, #tpu.memory_space<vmem>>, vector<1x128xf32>
    %5 = vector.broadcast %4 : vector<1x128xf32> to vector<16x128xf32>
    %6 = arith.addf %3, %5 : vector<16x128xf32>
    %c0_5 = arith.constant 0 : index
    %c0_6 = arith.constant 0 : index
    %7 = vector.load %arg4[%c0_5, %c0_6] : memref<16x128xf32, #tpu.memory_space<vmem>>, vector<16x128xf32>
    tpu.vector_store %arg4[%c0_5, %c0_6], %6 {strides = array<i32>} : memref<16x128xf32, #tpu.memory_space<vmem>>, vector<16x128xf32>,
    return
  }
  func.func @transform_0(%arg0: i32) -> (i32, i32) {
    %c0_i32 = arith.constant 0 : i32
    %c0_i32_0 = arith.constant 0 : i32
    return %arg0, %c0_i32 : i32, i32
  }
  func.func @transform_1(%arg0: i32) -> (i32, i32) {
    %c0_i32 = arith.constant 0 : i32
    %c0_i32_0 = arith.constant 0 : i32
    %c0_i32_1 = arith.constant 0 : i32
    return %c0_i32, %c0_i32_0 : i32, i32
  }
  func.func @transform_2(%arg0: i32) -> (i32, i32) {
    %c0_i32 = arith.constant 0 : i32
    %c0_i32_0 = arith.constant 0 : i32
    %c0_i32_1 = arith.constant 0 : i32
    return %c0_i32, %c0_i32_0 : i32, i32
  }
  func.func @transform_3(%arg0: i32) -> (i32, i32) {
    %c0_i32 = arith.constant 0 : i32
    %c0_i32_0 = arith.constant 0 : i32
    return %arg0, %c0_i32 : i32, i32
  }
}

</mosaic_0001>

<llo_original>
// kernel: _lambda_.21
$region0: #{_lambda_.21}
  #allocation0 [shape = 'u32[]', space=smem, size = 0x4, offset = 0x4, fixed_abs, tag = 'smem constant byte address 0x4 - core index']
  #allocation1 [shape = 'u32[144,128]{1,0:T(1,128)}', space=vmem, size = 0x12000, scoped, tag = 'internal scratch']
  %s0 = inlined_call_operand.vmem [shape: f32[16,32], index: 0, kind: input, shape index: {}]
  %s1 = inlined_call_operand.vmem [shape: bf16[32,128], index: 1, kind: input, shape index: {}]
  %s2 = inlined_call_operand.vmem [shape: f32[1,128], index: 2, kind: input, shape index: {}]
  %s3 = inlined_call_operand.vmem [shape: f32[16,128], index: 3, kind: output, shape index: {}]
  %s4 = sld [smem:[#allocation0]]
  $region22: #{_lambda_.21} parent=0
    _
  %s6 = ssub.s32 1, %s4
  %s7 = scalar_select 0, %s6, %s4
  // Predicated region
  $region2: #{_lambda_.21} parent=0 // pred_check
    _
  $region3: #{_lambda_.21} parent=0 // pred_check_branch
    %9 = sbr.rel (0) target = $region5
  $region4: #{_lambda_.21} parent=0 // pred_region
    _
  $region5: #{_lambda_.21} parent=0 // pred_fallthru
    _
  // Predicated region
  $region6: #{_lambda_.21} parent=0 // pred_check
    _
  $region7: #{_lambda_.21} parent=0 // pred_check_branch
    %11 = sbr.rel (0) target = $region9
  $region8: #{_lambda_.21} parent=0 // pred_region
    _
  $region9: #{_lambda_.21} parent=0 // pred_fallthru
    _
  // Predicated region
  $region10: #{_lambda_.21} parent=0 // pred_check
    _
  $region11: #{_lambda_.21} parent=0 // pred_check_branch
    %13 = sbr.rel (0) target = $region13
  $region12: #{_lambda_.21} parent=0 // pred_region
    _
  $region13: #{_lambda_.21} parent=0 // pred_fallthru
    _
  %v15 = vld [vmem:[%s0] sm:$0xff]
  %v16 = vld [vmem:[%s0 + $0x8] sm:$0xff]
  %v17 = vpack.c.bf16 %v16, %v15
  %v18 = vld [vmem:[%s1] sm:$0xf]
  %v19 = vld [vmem:[%s1 + $0x4] sm:$0xf]
  %v20 = vld [vmem:[%s1 + $0x8] sm:$0xf]
  %v21 = vld [vmem:[%s1 + $0xc] sm:$0xf]
  %v22 = vld [vmem:[%s2] sm:$0x1]
  %v24 = vlaneseq
  %v25 = vshrl.u32 %v24, 7
  %v26 = vsub.s32 0, %v25
  %v27 = vrot.slane %v22, %v26
  %v33 = vunpack.c.l.b16 %v18
  %v34 = vunpack.c.l.b16 %v19
  %v35 = vunpack.c.l.b16 %v20
  %v36 = vunpack.c.l.b16 %v21
  %v37 = vpack.c.b16 %v34, %v33
  %v38 = vpack.c.b16 %v36, %v35
  %vm41 = vcmask 261120
  %v43 = vsel %vm41, %v17, 0
  %45 = vmatprep.subr.bf16.mxu0 0
  %46 = vmatpush1.bf16.msra.mxu0 0
  %47 = vmatprep.subr.bf16.mxu0 0
  %48 = vmatpush1.bf16.msra.mxu0 0
  %49 = vmatprep.subr.bf16.mxu0 0
  %50 = vmatpush1.bf16.msra.mxu0 0
  %51 = vmatprep.subr.bf16.mxu0 0
  %52 = vmatpush1.bf16.msra.mxu0 0
  %53 = vmatprep.subr.bf16.mxu0 0
  %54 = vmatpush1.bf16.msra.mxu0 0
  %55 = vmatprep.subr.bf16.mxu0 0
  %56 = vmatpush1.bf16.msra.mxu0 0
  %57 = vmatprep.subr.bf16.mxu0 0
  %58 = vmatpush1.bf16.msra.mxu0 %v38
  %59 = vmatprep.subr.bf16.mxu0 0
  %60 = vmatpush1.bf16.msra.mxu0 %v37
  %61 = vmatprep.subr.bf16.mxu0 0
  %62 = vmatpush2.bf16.msra.mxu0 0
  %63 = vmatprep.subr.bf16.mxu0 0
  %64 = vmatpush2.bf16.msra.mxu0 0
  %65 = vmatprep.subr.bf16.mxu0 0
  %66 = vmatpush2.bf16.msra.mxu0 0
  %67 = vmatprep.subr.bf16.mxu0 0
  %68 = vmatpush2.bf16.msra.mxu0 0
  %69 = vmatprep.subr.bf16.mxu0 0
  %70 = vmatpush2.bf16.msra.mxu0 0
  %71 = vmatprep.subr.bf16.mxu0 0
  %72 = vmatpush2.bf16.msra.mxu0 0
  %73 = vmatprep.subr.bf16.mxu0 0
  %74 = vmatpush2.bf16.msra.mxu0 0
  %75 = vmatprep.subr.bf16.mxu0 0
  %76 = vmatpush2.bf16.msra.mxu0 0
  %77 = vmatprep.mubr.bf16.mxu0 0
  %78 = vmatmul.mubr.bf16.gmra.mxu0 %v43
  %v79 = vpop.f32.mrf.mxu0
  %v80 = vadd.f32 %v27, %v79
  %v81 = vpop.f32.mrf.mxu0
  %v82 = vpop.f32.mrf.mxu0
  %v83 = vadd.f32 %v27, %v82
  %v84 = vpop.f32.mrf.mxu0
  %85 = vdwg.mxu0
  %86 = vst [vmem:[%s3] sm:$0xff] %v80
  %87 = vst [vmem:[%s3 + $0x8] sm:$0xff] %v83
  // Predicated region
  $region14: #{_lambda_.21} parent=0 // pred_check
    _
  $region15: #{_lambda_.21} parent=0 // pred_check_branch
    %89 = sbr.rel (0) target = $region17
  $region16: #{_lambda_.21} parent=0 // pred_region
    _
  $region17: #{_lambda_.21} parent=0 // pred_fallthru
    _
  // Predicated region
  $region18: #{_lambda_.21} parent=0 // pred_check
    _
  $region19: #{_lambda_.21} parent=0 // pred_check_branch
    %91 = sbr.rel (0) target = $region21
  $region20: #{_lambda_.21} parent=0 // pred_region
    _
  $region21: #{_lambda_.21} parent=0 // pred_fallthru
    _

// kernel: _lambda_.12
$region0: #{_lambda_.12}
  #allocation0 [shape = 'u32[]', space=smem, size = 0x4, offset = 0x4, fixed_abs, tag = 'smem constant byte address 0x4 - core index']
  #allocation1 [shape = 'u32[144,128]{1,0:T(1,128)}', space=vmem, size = 0x12000, scoped, tag = 'internal scratch']
  %s0 = inlined_call_operand.vmem [shape: f32[2,8,32], index: 0, kind: input, shape index: {}]
  %s1 = inlined_call_operand.vmem [shape: bf16[32,64], index: 1, kind: input, shape index: {}]
  %s2 = inlined_call_operand.vmem [shape: f32[1,64], index: 2, kind: input, shape index: {}]
  %s3 = inlined_call_operand.vmem [shape: bf16[64,32], index: 3, kind: input, shape index: {}]
  %s4 = inlined_call_operand.vmem [shape: f32[1,32], index: 4, kind: input, shape index: {}, may-alias: {4,6}]
  %s5 = inlined_call_operand.vmem [shape: f32[1,32], index: 5, kind: input, shape index: {}]
  %s6 = inlined_call_operand.vmem [shape: f32[1,32], index: 6, kind: input, shape index: {}, may-alias: {4,6}]
  %s7 = inlined_call_operand.vmem [shape: f32[2,8,32], index: 7, kind: output, shape index: {}]
  %s8 = sld [smem:[#allocation0]]
  $region61: #{_lambda_.12} parent=0
    _
  %s10 = ssub.s32 1, %s8
  %s11 = scalar_select 0, %s10, %s8
  loop: start=0, step=1, limit=4
  $region2: #{_lambda_.12} parent=0 // loop_pre_header
    _
  $region3: #{_lambda_.12} parent=0 // loop_header
    %s13 = sphi 0, %s17
    %p14 = scmp.ge.s32.totalorder %s13, 4
    %s23 = sphi 0, %s25
    %s26 = sphi 0, %s23
    %s27 = sphi 0, %s26
    %s43 = sphi 0, %s27
    %s47 = sphi 0, %s47
    %s49 = sphi 0, %s47
    %s50 = sphi 0, %s49
    %s64 = sphi 0, %s50
    %s68 = sphi 0, %s68
    %s70 = sphi 0, %s68
    %s71 = sphi 0, %s70
    %s85 = sphi 0, %s71
    %s89 = sphi 0, %s89
    %s91 = sphi 0, %s89
    %s92 = sphi 0, %s91
    %s106 = sphi 0, %s92
    %s110 = sphi 0, %s110
    %s112 = sphi 0, %s110
    %s113 = sphi 0, %s112
    %s127 = sphi 0, %s113
    %s131 = sphi 0, %s131
    %s133 = sphi 0, %s131
    %s134 = sphi 0, %s133
    %s148 = sphi 0, %s134
    %s152 = sphi 0, %s152
    %s154 = sphi 0, %s152
    %s155 = sphi 0, %s154
    %s169 = sphi 0, %s155
    %s175 = sphi 0, %s177
    %s178 = sphi 0, %s175
    %s179 = sphi 0, %s178
    %s195 = sphi 0, %s179
  $region4: #{_lambda_.12} parent=0 // loop_header_branch
    %16 = sbr.rel (%p14) target = $region8
  $region5: #{_lambda_.12} parent=0 // loop_body
    %s18 = ssub.s32 %s13, 1
    %s19 = ssub.s32 %s13, 2
    %s20 = sadd.s32 %s13, 1
    %s21 = ssub.s32 %s13, %s20
    %p22 = scmp.eq.s32.totalorder %s21, 0
    %s24 = sadd.s32 %s23, 1
    %s25 = scalar_select %p22, %s23, %s24
    %p28 = pneg %p22
    %p29 = scmp.eq.s32.totalorder %s13, 1
    %p30 = por %p28, %p29
    %p31 = scmp.ne.s32.totalorder %s23, %s26
    %p32 = scmp.eq.s32.totalorder %s13, 0
    %p33 = por %p31, %p32
    %p34 = scmp.ne.s32.totalorder %s23, %s26
    %p35 = scmp.eq.s32.totalorder %s18, 1
    %p36 = por %p34, %p35
    %p37 = scmp.ne.s32.totalorder %s26, %s27
    %p38 = scmp.eq.s32.totalorder %s18, 0
    %p39 = por %p37, %p38
    %p40 = scmp.ne.s32.totalorder %s26, %s27
    %p41 = scmp.eq.s32.totalorder %s19, 1
    %p42 = por %p40, %p41
    %p44 = scmp.ne.s32.totalorder %s27, %s43
    %p45 = scmp.eq.s32.totalorder %s19, 0
    %p46 = por %p44, %p45
    %s48 = sadd.s32 %s47, 1
    %p51 = scmp.eq.s32.totalorder %s13, 1
    %p52 = scmp.ne.s32.totalorder %s47, %s49
    %p53 = scmp.eq.s32.totalorder %s13, 0
    %p54 = por %p52, %p53
    %p55 = scmp.ne.s32.totalorder %s47, %s49
    %p56 = scmp.eq.s32.totalorder %s18, 1
    %p57 = por %p55, %p56
    %p58 = scmp.ne.s32.totalorder %s49, %s50
    %p59 = scmp.eq.s32.totalorder %s18, 0
    %p60 = por %p58, %p59
    %p61 = scmp.ne.s32.totalorder %s49, %s50
    %p62 = scmp.eq.s32.totalorder %s19, 1
    %p63 = por %p61, %p62
    %p65 = scmp.ne.s32.totalorder %s50, %s64
    %p66 = scmp.eq.s32.totalorder %s19, 0
    %p67 = por %p65, %p66
    %s69 = sadd.s32 %s68, 1
    %p72 = scmp.eq.s32.totalorder %s13, 1
    %p73 = scmp.ne.s32.totalorder %s68, %s70
    %p74 = scmp.eq.s32.totalorder %s13, 0
    %p75 = por %p73, %p74
    %p76 = scmp.ne.s32.totalorder %s68, %s70
    %p77 = scmp.eq.s32.totalorder %s18, 1
    %p78 = por %p76, %p77
    %p79 = scmp.ne.s32.totalorder %s70, %s71
    %p80 = scmp.eq.s32.totalorder %s18, 0
    %p81 = por %p79, %p80
    %p82 = scmp.ne.s32.totalorder %s70, %s71
    %p83 = scmp.eq.s32.totalorder %s19, 1
    %p84 = por %p82, %p83
    %p86 = scmp.ne.s32.totalorder %s71, %s85
    %p87 = scmp.eq.s32.totalorder %s19, 0
    %p88 = por %p86, %p87
    %s90 = sadd.s32 %s89, 1
    %p93 = scmp.eq.s32.totalorder %s13, 1
    %p94 = scmp.ne.s32.totalorder %s89, %s91
    %p95 = scmp.eq.s32.totalorder %s13, 0
    %p96 = por %p94, %p95
    %p97 = scmp.ne.s32.totalorder %s89, %s91
    %p98 = scmp.eq.s32.totalorder %s18, 1
    %p99 = por %p97, %p98
    %p100 = scmp.ne.s32.totalorder %s91, %s92
    %p101 = scmp.eq.s32.totalorder %s18, 0
    %p102 = por %p100, %p101
    %p103 = scmp.ne.s32.totalorder %s91, %s92
    %p104 = scmp.eq.s32.totalorder %s19, 1
    %p105 = por %p103, %p104
    %p107 = scmp.ne.s32.totalorder %s92, %s106
    %p108 = scmp.eq.s32.totalorder %s19, 0
    %p109 = por %p107, %p108
    %s111 = sadd.s32 %s110, 1
    %p114 = scmp.eq.s32.totalorder %s13, 1
    %p115 = scmp.ne.s32.totalorder %s110, %s112
    %p116 = scmp.eq.s32.totalorder %s13, 0
    %p117 = por %p115, %p116
    %p118 = scmp.ne.s32.totalorder %s110, %s112
    %p119 = scmp.eq.s32.totalorder %s18, 1
    %p120 = por %p118, %p119
    %p121 = scmp.ne.s32.totalorder %s112, %s113
    %p122 = scmp.eq.s32.totalorder %s18, 0
    %p123 = por %p121, %p122
    %p124 = scmp.ne.s32.totalorder %s112, %s113
    %p125 = scmp.eq.s32.totalorder %s19, 1
    %p126 = por %p124, %p125
    %p128 = scmp.ne.s32.totalorder %s113, %s127
    %p129 = scmp.eq.s32.totalorder %s19, 0
    %p130 = por %p128, %p129
    %s132 = sadd.s32 %s131, 1
    %p135 = scmp.eq.s32.totalorder %s13, 1
    %p136 = scmp.ne.s32.totalorder %s131, %s133
    %p137 = scmp.eq.s32.totalorder %s13, 0
    %p138 = por %p136, %p137
    %p139 = scmp.ne.s32.totalorder %s131, %s133
    %p140 = scmp.eq.s32.totalorder %s18, 1
    %p141 = por %p139, %p140
    %p142 = scmp.ne.s32.totalorder %s133, %s134
    %p143 = scmp.eq.s32.totalorder %s18, 0
    %p144 = por %p142, %p143
    %p145 = scmp.ne.s32.totalorder %s133, %s134
    %p146 = scmp.eq.s32.totalorder %s19, 1
    %p147 = por %p145, %p146
    %p149 = scmp.ne.s32.totalorder %s134, %s148
    %p150 = scmp.eq.s32.totalorder %s19, 0
    %p151 = por %p149, %p150
    %s153 = sadd.s32 %s152, 1
    %p156 = scmp.eq.s32.totalorder %s13, 1
    %p157 = scmp.ne.s32.totalorder %s152, %s154
    %p158 = scmp.eq.s32.totalorder %s13, 0
    %p159 = por %p157, %p158
    %p160 = scmp.ne.s32.totalorder %s152, %s154
    %p161 = scmp.eq.s32.totalorder %s18, 1
    %p162 = por %p160, %p161
    %p163 = scmp.ne.s32.totalorder %s154, %s155
    %p164 = scmp.eq.s32.totalorder %s18, 0
    %p165 = por %p163, %p164
    %p166 = scmp.ne.s32.totalorder %s154, %s155
    %p167 = scmp.eq.s32.totalorder %s19, 1
    %p168 = por %p166, %p167
    %p170 = scmp.ne.s32.totalorder %s155, %s169
    %p171 = scmp.eq.s32.totalorder %s19, 0
    %p172 = por %p170, %p171
    %s173 = ssub.s32 %s13, %s20
    %p174 = scmp.eq.s32.totalorder %s173, 0
    %s176 = sadd.s32 %s175, 1
    %s177 = scalar_select %p174, %s175, %s176
    %p180 = pneg %p174
    %p181 = scmp.eq.s32.totalorder %s13, 1
    %p182 = por %p180, %p181
    %p183 = scmp.ne.s32.totalorder %s175, %s178
    %p184 = scmp.eq.s32.totalorder %s13, 0
    %p185 = por %p183, %p184
    %p186 = scmp.ne.s32.totalorder %s175, %s178
    %p187 = scmp.eq.s32.totalorder %s18, 1
    %p188 = por %p186, %p187
    %p189 = scmp.ne.s32.totalorder %s178, %s179
    %p190 = scmp.eq.s32.totalorder %s18, 0
    %p191 = por %p189, %p190
    %p192 = scmp.ne.s32.totalorder %s178, %s179
    %p193 = scmp.eq.s32.totalorder %s19, 1
    %p194 = por %p192, %p193
    %p196 = scmp.ne.s32.totalorder %s179, %s195
    %p197 = scmp.eq.s32.totalorder %s19, 0
    %p198 = por %p196, %p197
    %p199 = scmp.le.s32.totalorder 1, %s13
    %p200 = scmp.lt.s32.totalorder %s13, 3
    %p201 = pnand %p199, %p200
    %p202 = pneg %p201
    // Predicated region
    $region9: #{_lambda_.12} parent=5 // pred_check
      _
    $region10: #{_lambda_.12} parent=5 // pred_check_branch
      %204 = sbr.rel (%p201) target = $region12
    $region11: #{_lambda_.12} parent=5 // pred_region
      %s205 = ssub.s32 %s13, 1
      // Predicated region
      $region13: #{_lambda_.12} parent=11 // pred_check
        %p206 = pneg %p60
      $region14: #{_lambda_.12} parent=11 // pred_check_branch
        %208 = sbr.rel (%p206) target = $region16
      $region15: #{_lambda_.12} parent=11 // pred_region
        _
      $region16: #{_lambda_.12} parent=11 // pred_fallthru
        _
      // Predicated region
      $region17: #{_lambda_.12} parent=11 // pred_check
        %p209 = pneg %p81
      $region18: #{_lambda_.12} parent=11 // pred_check_branch
        %211 = sbr.rel (%p209) target = $region20
      $region19: #{_lambda_.12} parent=11 // pred_region
        _
      $region20: #{_lambda_.12} parent=11 // pred_fallthru
        _
      // Predicated region
      $region21: #{_lambda_.12} parent=11 // pred_check
        %p212 = pneg %p102
      $region22: #{_lambda_.12} parent=11 // pred_check_branch
        %214 = sbr.rel (%p212) target = $region24
      $region23: #{_lambda_.12} parent=11 // pred_region
        _
      $region24: #{_lambda_.12} parent=11 // pred_fallthru
        _
      // Predicated region
      $region25: #{_lambda_.12} parent=11 // pred_check
        %p215 = pneg %p123
      $region26: #{_lambda_.12} parent=11 // pred_check_branch
        %217 = sbr.rel (%p215) target = $region28
      $region27: #{_lambda_.12} parent=11 // pred_region
        _
      $region28: #{_lambda_.12} parent=11 // pred_fallthru
        _
      // Predicated region
      $region29: #{_lambda_.12} parent=11 // pred_check
        %p218 = pneg %p144
      $region30: #{_lambda_.12} parent=11 // pred_check_branch
        %220 = sbr.rel (%p218) target = $region32
      $region31: #{_lambda_.12} parent=11 // pred_region
        _
      $region32: #{_lambda_.12} parent=11 // pred_fallthru
        _
      // Predicated region
      $region33: #{_lambda_.12} parent=11 // pred_check
        %p221 = pneg %p165
      $region34: #{_lambda_.12} parent=11 // pred_check_branch
        %223 = sbr.rel (%p221) target = $region36
      $region35: #{_lambda_.12} parent=11 // pred_region
        _
      $region36: #{_lambda_.12} parent=11 // pred_fallthru
        _
    $region12: #{_lambda_.12} parent=5 // pred_fallthru
      _
    %p224 = scmp.lt.s32.totalorder %s13, 2
    // Predicated region
    $region37: #{_lambda_.12} parent=5 // pred_check
      %p225 = pneg %p224
    $region38: #{_lambda_.12} parent=5 // pred_check_branch
      %227 = sbr.rel (%p225) target = $region40
    $region39: #{_lambda_.12} parent=5 // pred_region
      // Predicated region
      $region41: #{_lambda_.12} parent=39 // pred_check
        %p228 = pneg %p33
      $region42: #{_lambda_.12} parent=39 // pred_check_branch
        %230 = sbr.rel (%p228) target = $region44
      $region43: #{_lambda_.12} parent=39 // pred_region
        %p231 = scmp.lt.s32.totalorder %s13, 1
        %s232 = scalar_select %p231, %s13, 1
        %s233 = smul.addr %s232, 8
        %s234 = scalar_lea.vmem %s0, %s233
      $region44: #{_lambda_.12} parent=39 // pred_fallthru
        _
    $region40: #{_lambda_.12} parent=5 // pred_fallthru
      _
    %p235 = scmp.le.s32.totalorder 1, %s13
    %p236 = scmp.lt.s32.totalorder %s13, 3
    %p237 = pnand %p235, %p236
    %p238 = pneg %p237
    // Predicated region
    $region45: #{_lambda_.12} parent=5 // pred_check
      _
    $region46: #{_lambda_.12} parent=5 // pred_check_branch
      %240 = sbr.rel (%p237) target = $region48
    $region47: #{_lambda_.12} parent=5 // pred_region
      %s241 = ssub.s32 %s13, 1
      %p242 = scmp.lt.s32.totalorder %s18, 1
      %s243 = scalar_select %p242, %s18, 1
      %s244 = smul.addr %s243, 8
      %s245 = scalar_lea.vmem %s0, %s244
      %p246 = pneg %p39
      %p247 = pneg %p36
      %p248 = pneg %p60
      %p249 = pneg %p57
      %p250 = pneg %p81
      %p251 = pneg %p78
      %p252 = pneg %p102
      %p253 = pneg %p99
      %p254 = pneg %p123
      %p255 = pneg %p120
      %p256 = pneg %p144
      %p257 = pneg %p141
      %p258 = pneg %p165
      %p259 = pneg %p162
      %p260 = pneg %p191
      %p261 = pneg %p188
      %p262 = scmp.lt.s32.totalorder %s18, 1
      %s263 = scalar_select %p262, %s18, 1
      %s264 = smul.addr %s263, 8
      %s265 = scalar_lea.vmem %s7, %s264
      %p266 = scmp.lt.s32.totalorder %s18, 1
      %s267 = scalar_select %p266, %s18, 1
      %s268 = smul.addr %s267, 8
      %s269 = scalar_lea.vmem %s0, %s268
      %p270 = scmp.lt.s32.totalorder %s18, 1
      %s271 = scalar_select %p270, %s18, 1
      %s272 = smul.addr %s271, 8
      %s273 = scalar_lea.vmem %s7, %s272
      %v275 = vld [vmem:[%s269] sm:$0xff]
      %v276 = vpack.c.bf16 %v275, %v275
      %v277 = vld [vmem:[%s1] sm:$0xf]
      %v278 = vld [vmem:[%s1 + $0x4] sm:$0xf]
      %v279 = vld [vmem:[%s1 + $0x8] sm:$0xf]
      %v280 = vld [vmem:[%s1 + $0xc] sm:$0xf]
      %v281 = vld [vmem:[%s2] sm:$0x1]
      %v283 = vlaneseq
      %v284 = vshrl.u32 %v283, 7
      %v285 = vsub.s32 0, %v284
      %v286 = vrot.slane %v281, %v285
      %v292 = vunpack.c.l.b16 %v277
      %v293 = vunpack.c.l.b16 %v278
      %v294 = vunpack.c.l.b16 %v279
      %v295 = vunpack.c.l.b16 %v280
      %v296 = vpack.c.b16 %v293, %v292
      %v297 = vpack.c.b16 %v295, %v294
      %vm300 = vcmask 261120
      %v302 = vsel %vm300, %v276, 0
      %304 = vmatprep.subr.bf16.mxu0 0
      %305 = vmatpush1.bf16.msra.mxu0 0
      %306 = vmatprep.subr.bf16.mxu0 0
      %307 = vmatpush1.bf16.msra.mxu0 0
      %308 = vmatprep.subr.bf16.mxu0 0
      %309 = vmatpush1.bf16.msra.mxu0 0
      %310 = vmatprep.subr.bf16.mxu0 0
      %311 = vmatpush1.bf16.msra.mxu0 0
      %312 = vmatprep.subr.bf16.mxu0 0
      %313 = vmatpush1.bf16.msra.mxu0 0
      %314 = vmatprep.subr.bf16.mxu0 0
      %315 = vmatpush1.bf16.msra.mxu0 0
      %316 = vmatprep.subr.bf16.mxu0 0
      %317 = vmatpush1.bf16.msra.mxu0 %v297
      %318 = vmatprep.subr.bf16.mxu0 0
      %319 = vmatpush1.bf16.msra.mxu0 %v296
      %320 = vmatprep.subr.bf16.mxu0 0
      %321 = vmatpush2.bf16.msra.mxu0 0
      %322 = vmatprep.subr.bf16.mxu0 0
      %323 = vmatpush2.bf16.msra.mxu0 0
      %324 = vmatprep.subr.bf16.mxu0 0
      %325 = vmatpush2.bf16.msra.mxu0 0
      %326 = vmatprep.subr.bf16.mxu0 0
      %327 = vmatpush2.bf16.msra.mxu0 0
      %328 = vmatprep.subr.bf16.mxu0 0
      %329 = vmatpush2.bf16.msra.mxu0 0
      %330 = vmatprep.subr.bf16.mxu0 0
      %331 = vmatpush2.bf16.msra.mxu0 0
      %332 = vmatprep.subr.bf16.mxu0 0
      %333 = vmatpush2.bf16.msra.mxu0 0
      %334 = vmatprep.subr.bf16.mxu0 0
      %335 = vmatpush2.bf16.msra.mxu0 0
      %336 = vmatprep.mubr.bf16.mxu0 0
      %337 = vmatmul.mubr.bf16.gmra.mxu0 %v302
      %v338 = vpop.f32.mrf.mxu0
      %v339 = vadd.f32 %v286, %v338
      %v340 = vpop.f32.mrf.mxu0
      %v341 = vpop.f32.mrf.mxu0
      %v342 = vpop.f32.mrf.mxu0
      %343 = vdwg.mxu0
      %v344 = vmax.f32 %v339, 0.0
      %v345 = vpack.c.bf16 %v344, %v344
      %v346 = vld [vmem:[%s3] sm:$0xf]
      %v347 = vld [vmem:[%s3 + $0x4] sm:$0xf]
      %v348 = vld [vmem:[%s3 + $0x8] sm:$0xf]
      %v349 = vld [vmem:[%s3 + $0xc] sm:$0xf]
      %v350 = vld [vmem:[%s3 + $0x10] sm:$0xf]
      %v351 = vld [vmem:[%s3 + $0x14] sm:$0xf]
      %v352 = vld [vmem:[%s3 + $0x18] sm:$0xf]
      %v353 = vld [vmem:[%s3 + $0x1c] sm:$0xf]
      %v354 = vld [vmem:[%s4] sm:$0x1]
      %v356 = vlaneseq
      %v357 = vshrl.u32 %v356, 7
      %v358 = vsub.s32 0, %v357
      %v359 = vrot.slane %v354, %v358
      %v369 = vunpack.c.l.b16 %v346
      %v370 = vunpack.c.l.b16 %v347
      %v371 = vunpack.c.l.b16 %v348
      %v372 = vunpack.c.l.b16 %v349
      %v373 = vunpack.c.l.b16 %v350
      %v374 = vunpack.c.l.b16 %v351
      %v375 = vunpack.c.l.b16 %v352
      %v376 = vunpack.c.l.b16 %v353
      %v377 = vpack.c.b16 %v370, %v369
      %v378 = vpack.c.b16 %v372, %v371
      %v379 = vpack.c.b16 %v374, %v373
      %v380 = vpack.c.b16 %v376, %v375
      %vm385 = vcmask 523264
      %v387 = vsel %vm385, %v345, 0
      %389 = vmatprep.subr.bf16.mxu0 0
      %390 = vmatpush1.bf16.msra.mxu0 0
      %391 = vmatprep.subr.bf16.mxu0 0
      %392 = vmatpush1.bf16.msra.mxu0 0
      %393 = vmatprep.subr.bf16.mxu0 0
      %394 = vmatpush1.bf16.msra.mxu0 0
      %395 = vmatprep.subr.bf16.mxu0 0
      %396 = vmatpush1.bf16.msra.mxu0 0
      %397 = vmatprep.subr.bf16.mxu0 0
      %398 = vmatpush1.bf16.msra.mxu0 %v380
      %399 = vmatprep.subr.bf16.mxu0 0
      %400 = vmatpush1.bf16.msra.mxu0 %v379
      %401 = vmatprep.subr.bf16.mxu0 0
      %402 = vmatpush1.bf16.msra.mxu0 %v378
      %403 = vmatprep.subr.bf16.mxu0 0
      %404 = vmatpush1.bf16.msra.mxu0 %v377
      %405 = vmatprep.subr.bf16.mxu0 0
      %406 = vmatpush2.bf16.msra.mxu0 0
      %407 = vmatprep.subr.bf16.mxu0 0
      %408 = vmatpush2.bf16.msra.mxu0 0
      %409 = vmatprep.subr.bf16.mxu0 0
      %410 = vmatpush2.bf16.msra.mxu0 0
      %411 = vmatprep.subr.bf16.mxu0 0
      %412 = vmatpush2.bf16.msra.mxu0 0
      %413 = vmatprep.subr.bf16.mxu0 0
      %414 = vmatpush2.bf16.msra.mxu0 0
      %415 = vmatprep.subr.bf16.mxu0 0
      %416 = vmatpush2.bf16.msra.mxu0 0
      %417 = vmatprep.subr.bf16.mxu0 0
      %418 = vmatpush2.bf16.msra.mxu0 0
      %419 = vmatprep.subr.bf16.mxu0 0
      %420 = vmatpush2.bf16.msra.mxu0 0
      %421 = vmatprep.mubr.bf16.mxu0 0
      %422 = vmatmul.mubr.bf16.gmra.mxu0 %v387
      %v423 = vpop.f32.mrf.mxu0
      %v424 = vadd.f32 %v359, %v423
      %v425 = vpop.f32.mrf.mxu0
      %v426 = vpop.f32.mrf.mxu0
      %v427 = vpop.f32.mrf.mxu0
      %428 = vdwg.mxu0
      %v429 = vadd.f32 %v424, %v275
      %v430 = vsel %vm300, %v429, 0.0
      %431 = vadd.xlane.f32.xlu0 %v430
      %v432 = vpop.xlane.xlu0 %431
      %v433 = vrcp.pop 32.0
      %v434 = vmul.f32 %v432, %v433
      %v435 = vsub.f32 %v429, %v434
      %v436 = vmul.f32 %v435, %v435
      %v437 = vsel %vm300, %v436, 0.0
      %438 = vadd.xlane.f32.xlu0 %v437
      %v439 = vpop.xlane.xlu0 %438
      %v440 = vmul.f32 %v439, %v433
      %v441 = vadd.f32 %v440, 1e-12
      %v442 = vrsqrt.pop %v441
      %v443 = vmul.f32 %v435, %v442
      %v444 = vld [vmem:[%s5] sm:$0x1]
      %v446 = vlaneseq
      %v447 = vshrl.u32 %v446, 7
      %v448 = vsub.s32 0, %v447
      %v449 = vrot.slane %v444, %v448
      %v451 = vmul.f32 %v443, %v449
      %v452 = vld [vmem:[%s6] sm:$0x1]
      %v454 = vlaneseq
      %v455 = vshrl.u32 %v454, 7
      %v456 = vsub.s32 0, %v455
      %v457 = vrot.slane %v452, %v456
      %v459 = vadd.f32 %v451, %v457
      %460 = vst.msk [vmem:[%s273] sm:$0xff] %vm300, %v459
      %p461 = scmp.lt.s32.totalorder %s18, 1
      %s462 = scalar_select %p461, %s18, 1
      %s463 = smul.addr %s462, 8
      %s464 = scalar_lea.vmem %s7, %s463
      // Predicated region
      $region49: #{_lambda_.12} parent=47 // pred_check
        %p465 = pneg %p188
      $region50: #{_lambda_.12} parent=47 // pred_check_branch
        %467 = sbr.rel (%p465) target = $region52
      $region51: #{_lambda_.12} parent=47 // pred_region
        _
      $region52: #{_lambda_.12} parent=47 // pred_fallthru
        _
    $region48: #{_lambda_.12} parent=5 // pred_fallthru
      _
    %p468 = scmp.le.s32.totalorder 2, %s13
    // Predicated region
    $region53: #{_lambda_.12} parent=5 // pred_check
      %p469 = pneg %p468
    $region54: #{_lambda_.12} parent=5 // pred_check_branch
      %471 = sbr.rel (%p469) target = $region56
    $region55: #{_lambda_.12} parent=5 // pred_region
      %s472 = ssub.s32 %s13, 2
      // Predicated region
      $region57: #{_lambda_.12} parent=55 // pred_check
        %p473 = pneg %p194
      $region58: #{_lambda_.12} parent=55 // pred_check_branch
        %475 = sbr.rel (%p473) target = $region60
      $region59: #{_lambda_.12} parent=55 // pred_region
        %p476 = scmp.lt.s32.totalorder %s19, 1
        %s477 = scalar_select %p476, %s19, 1
        %s478 = smul.addr %s477, 8
        %s479 = scalar_lea.vmem %s7, %s478
      $region60: #{_lambda_.12} parent=55 // pred_fallthru
        _
    $region56: #{_lambda_.12} parent=5 // pred_fallthru
      _
  $region6: #{_lambda_.12} parent=0 // loop_footer
    %s17 = sadd.s32 1, %s13
  $region7: #{_lambda_.12} parent=0 // loop_footer_branch
    %12 = sbr.rel target = $region3
  $region8: #{_lambda_.12} parent=0 // loop_exit
    _

// kernel: _lambda_.15
$region0: #{_lambda_.15}
  #allocation0 [shape = 'u32[]', space=smem, size = 0x4, offset = 0x4, fixed_abs, tag = 'smem constant byte address 0x4 - core index']
  #allocation1 [shape = 'u32[144,128]{1,0:T(1,128)}', space=vmem, size = 0x12000, scoped, tag = 'internal scratch']
  %s0 = inlined_call_operand.vmem [shape: f32[2,8,32], index: 0, kind: input, shape index: {}, may-alias: {0,1}]
  %s1 = inlined_call_operand.vmem [shape: f32[2,8,32], index: 1, kind: input, shape index: {}, may-alias: {0,1}]
  %s2 = inlined_call_operand.vmem [shape: f32[2,8,8], index: 2, kind: input, shape index: {}]
  %s3 = inlined_call_operand.vmem [shape: bf16[32,32], index: 3, kind: input, shape index: {}]
  %s4 = inlined_call_operand.vmem [shape: f32[1,32], index: 4, kind: input, shape index: {}, may-alias: {4,8,10}]
  %s5 = inlined_call_operand.vmem [shape: bf16[32,64], index: 5, kind: input, shape index: {}]
  %s6 = inlined_call_operand.vmem [shape: f32[1,64], index: 6, kind: input, shape index: {}]
  %s7 = inlined_call_operand.vmem [shape: bf16[32,32], index: 7, kind: input, shape index: {}]
  %s8 = inlined_call_operand.vmem [shape: f32[1,32], index: 8, kind: input, shape index: {}, may-alias: {4,8,10}]
  %s9 = inlined_call_operand.vmem [shape: f32[1,32], index: 9, kind: input, shape index: {}]
  %s10 = inlined_call_operand.vmem [shape: f32[1,32], index: 10, kind: input, shape index: {}, may-alias: {4,8,10}]
  %s11 = inlined_call_operand.vmem [shape: f32[2,8,32], index: 11, kind: output, shape index: {}]
  %s12 = sld [smem:[#allocation0]]
  $region77: #{_lambda_.15} parent=0
    _
  %s14 = ssub.s32 1, %s12
  %s15 = scalar_select 0, %s14, %s12
  loop: start=0, step=1, limit=4
  $region2: #{_lambda_.15} parent=0 // loop_pre_header
    _
  $region3: #{_lambda_.15} parent=0 // loop_header
    %s17 = sphi 0, %s21
    %p18 = scmp.ge.s32.totalorder %s17, 4
    %s27 = sphi 0, %s29
    %s30 = sphi 0, %s27
    %s31 = sphi 0, %s30
    %s47 = sphi 0, %s31
    %s53 = sphi 0, %s55
    %s56 = sphi 0, %s53
    %s57 = sphi 0, %s56
    %s73 = sphi 0, %s57
    %s79 = sphi 0, %s81
    %s82 = sphi 0, %s79
    %s83 = sphi 0, %s82
    %s99 = sphi 0, %s83
    %s103 = sphi 0, %s103
    %s105 = sphi 0, %s103
    %s106 = sphi 0, %s105
    %s120 = sphi 0, %s106
    %s124 = sphi 0, %s124
    %s126 = sphi 0, %s124
    %s127 = sphi 0, %s126
    %s141 = sphi 0, %s127
    %s145 = sphi 0, %s145
    %s147 = sphi 0, %s145
    %s148 = sphi 0, %s147
    %s162 = sphi 0, %s148
    %s166 = sphi 0, %s166
    %s168 = sphi 0, %s166
    %s169 = sphi 0, %s168
    %s183 = sphi 0, %s169
    %s187 = sphi 0, %s187
    %s189 = sphi 0, %s187
    %s190 = sphi 0, %s189
    %s204 = sphi 0, %s190
    %s208 = sphi 0, %s208
    %s210 = sphi 0, %s208
    %s211 = sphi 0, %s210
    %s225 = sphi 0, %s211
    %s229 = sphi 0, %s229
    %s231 = sphi 0, %s229
    %s232 = sphi 0, %s231
    %s246 = sphi 0, %s232
    %s250 = sphi 0, %s250
    %s252 = sphi 0, %s250
    %s253 = sphi 0, %s252
    %s267 = sphi 0, %s253
    %s273 = sphi 0, %s275
    %s276 = sphi 0, %s273
    %s277 = sphi 0, %s276
    %s293 = sphi 0, %s277
  $region4: #{_lambda_.15} parent=0 // loop_header_branch
    %20 = sbr.rel (%p18) target = $region8
  $region5: #{_lambda_.15} parent=0 // loop_body
    %s22 = ssub.s32 %s17, 1
    %s23 = ssub.s32 %s17, 2
    %s24 = sadd.s32 %s17, 1
    %s25 = ssub.s32 %s17, %s24
    %p26 = scmp.eq.s32.totalorder %s25, 0
    %s28 = sadd.s32 %s27, 1
    %s29 = scalar_select %p26, %s27, %s28
    %p32 = pneg %p26
    %p33 = scmp.eq.s32.totalorder %s17, 1
    %p34 = por %p32, %p33
    %p35 = scmp.ne.s32.totalorder %s27, %s30
    %p36 = scmp.eq.s32.totalorder %s17, 0
    %p37 = por %p35, %p36
    %p38 = scmp.ne.s32.totalorder %s27, %s30
    %p39 = scmp.eq.s32.totalorder %s22, 1
    %p40 = por %p38, %p39
    %p41 = scmp.ne.s32.totalorder %s30, %s31
    %p42 = scmp.eq.s32.totalorder %s22, 0
    %p43 = por %p41, %p42
    %p44 = scmp.ne.s32.totalorder %s30, %s31
    %p45 = scmp.eq.s32.totalorder %s23, 1
    %p46 = por %p44, %p45
    %p48 = scmp.ne.s32.totalorder %s31, %s47
    %p49 = scmp.eq.s32.totalorder %s23, 0
    %p50 = por %p48, %p49
    %s51 = ssub.s32 %s17, %s24
    %p52 = scmp.eq.s32.totalorder %s51, 0
    %s54 = sadd.s32 %s53, 1
    %s55 = scalar_select %p52, %s53, %s54
    %p58 = pneg %p52
    %p59 = scmp.eq.s32.totalorder %s17, 1
    %p60 = por %p58, %p59
    %p61 = scmp.ne.s32.totalorder %s53, %s56
    %p62 = scmp.eq.s32.totalorder %s17, 0
    %p63 = por %p61, %p62
    %p64 = scmp.ne.s32.totalorder %s53, %s56
    %p65 = scmp.eq.s32.totalorder %s22, 1
    %p66 = por %p64, %p65
    %p67 = scmp.ne.s32.totalorder %s56, %s57
    %p68 = scmp.eq.s32.totalorder %s22, 0
    %p69 = por %p67, %p68
    %p70 = scmp.ne.s32.totalorder %s56, %s57
    %p71 = scmp.eq.s32.totalorder %s23, 1
    %p72 = por %p70, %p71
    %p74 = scmp.ne.s32.totalorder %s57, %s73
    %p75 = scmp.eq.s32.totalorder %s23, 0
    %p76 = por %p74, %p75
    %s77 = ssub.s32 %s17, %s24
    %p78 = scmp.eq.s32.totalorder %s77, 0
    %s80 = sadd.s32 %s79, 1
    %s81 = scalar_select %p78, %s79, %s80
    %p84 = pneg %p78
    %p85 = scmp.eq.s32.totalorder %s17, 1
    %p86 = por %p84, %p85
    %p87 = scmp.ne.s32.totalorder %s79, %s82
    %p88 = scmp.eq.s32.totalorder %s17, 0
    %p89 = por %p87, %p88
    %p90 = scmp.ne.s32.totalorder %s79, %s82
    %p91 = scmp.eq.s32.totalorder %s22, 1
    %p92 = por %p90, %p91
    %p93 = scmp.ne.s32.totalorder %s82, %s83
    %p94 = scmp.eq.s32.totalorder %s22, 0
    %p95 = por %p93, %p94
    %p96 = scmp.ne.s32.totalorder %s82, %s83
    %p97 = scmp.eq.s32.totalorder %s23, 1
    %p98 = por %p96, %p97
    %p100 = scmp.ne.s32.totalorder %s83, %s99
    %p101 = scmp.eq.s32.totalorder %s23, 0
    %p102 = por %p100, %p101
    %s104 = sadd.s32 %s103, 1
    %p107 = scmp.eq.s32.totalorder %s17, 1
    %p108 = scmp.ne.s32.totalorder %s103, %s105
    %p109 = scmp.eq.s32.totalorder %s17, 0
    %p110 = por %p108, %p109
    %p111 = scmp.ne.s32.totalorder %s103, %s105
    %p112 = scmp.eq.s32.totalorder %s22, 1
    %p113 = por %p111, %p112
    %p114 = scmp.ne.s32.totalorder %s105, %s106
    %p115 = scmp.eq.s32.totalorder %s22, 0
    %p116 = por %p114, %p115
    %p117 = scmp.ne.s32.totalorder %s105, %s106
    %p118 = scmp.eq.s32.totalorder %s23, 1
    %p119 = por %p117, %p118
    %p121 = scmp.ne.s32.totalorder %s106, %s120
    %p122 = scmp.eq.s32.totalorder %s23, 0
    %p123 = por %p121, %p122
    %s125 = sadd.s32 %s124, 1
    %p128 = scmp.eq.s32.totalorder %s17, 1
    %p129 = scmp.ne.s32.totalorder %s124, %s126
    %p130 = scmp.eq.s32.totalorder %s17, 0
    %p131 = por %p129, %p130
    %p132 = scmp.ne.s32.totalorder %s124, %s126
    %p133 = scmp.eq.s32.totalorder %s22, 1
    %p134 = por %p132, %p133
    %p135 = scmp.ne.s32.totalorder %s126, %s127
    %p136 = scmp.eq.s32.totalorder %s22, 0
    %p137 = por %p135, %p136
    %p138 = scmp.ne.s32.totalorder %s126, %s127
    %p139 = scmp.eq.s32.totalorder %s23, 1
    %p140 = por %p138, %p139
    %p142 = scmp.ne.s32.totalorder %s127, %s141
    %p143 = scmp.eq.s32.totalorder %s23, 0
    %p144 = por %p142, %p143
    %s146 = sadd.s32 %s145, 1
    %p149 = scmp.eq.s32.totalorder %s17, 1
    %p150 = scmp.ne.s32.totalorder %s145, %s147
    %p151 = scmp.eq.s32.totalorder %s17, 0
    %p152 = por %p150, %p151
    %p153 = scmp.ne.s32.totalorder %s145, %s147
    %p154 = scmp.eq.s32.totalorder %s22, 1
    %p155 = por %p153, %p154
    %p156 = scmp.ne.s32.totalorder %s147, %s148
    %p157 = scmp.eq.s32.totalorder %s22, 0
    %p158 = por %p156, %p157
    %p159 = scmp.ne.s32.totalorder %s147, %s148
    %p160 = scmp.eq.s32.totalorder %s23, 1
    %p161 = por %p159, %p160
    %p163 = scmp.ne.s32.totalorder %s148, %s162
    %p164 = scmp.eq.s32.totalorder %s23, 0
    %p165 = por %p163, %p164
    %s167 = sadd.s32 %s166, 1
    %p170 = scmp.eq.s32.totalorder %s17, 1
    %p171 = scmp.ne.s32.totalorder %s166, %s168
    %p172 = scmp.eq.s32.totalorder %s17, 0
    %p173 = por %p171, %p172
    %p174 = scmp.ne.s32.totalorder %s166, %s168
    %p175 = scmp.eq.s32.totalorder %s22, 1
    %p176 = por %p174, %p175
    %p177 = scmp.ne.s32.totalorder %s168, %s169
    %p178 = scmp.eq.s32.totalorder %s22, 0
    %p179 = por %p177, %p178
    %p180 = scmp.ne.s32.totalorder %s168, %s169
    %p181 = scmp.eq.s32.totalorder %s23, 1
    %p182 = por %p180, %p181
    %p184 = scmp.ne.s32.totalorder %s169, %s183
    %p185 = scmp.eq.s32.totalorder %s23, 0
    %p186 = por %p184, %p185
    %s188 = sadd.s32 %s187, 1
    %p191 = scmp.eq.s32.totalorder %s17, 1
    %p192 = scmp.ne.s32.totalorder %s187, %s189
    %p193 = scmp.eq.s32.totalorder %s17, 0
    %p194 = por %p192, %p193
    %p195 = scmp.ne.s32.totalorder %s187, %s189
    %p196 = scmp.eq.s32.totalorder %s22, 1
    %p197 = por %p195, %p196
    %p198 = scmp.ne.s32.totalorder %s189, %s190
    %p199 = scmp.eq.s32.totalorder %s22, 0
    %p200 = por %p198, %p199
    %p201 = scmp.ne.s32.totalorder %s189, %s190
    %p202 = scmp.eq.s32.totalorder %s23, 1
    %p203 = por %p201, %p202
    %p205 = scmp.ne.s32.totalorder %s190, %s204
    %p206 = scmp.eq.s32.totalorder %s23, 0
    %p207 = por %p205, %p206
    %s209 = sadd.s32 %s208, 1
    %p212 = scmp.eq.s32.totalorder %s17, 1
    %p213 = scmp.ne.s32.totalorder %s208, %s210
    %p214 = scmp.eq.s32.totalorder %s17, 0
    %p215 = por %p213, %p214
    %p216 = scmp.ne.s32.totalorder %s208, %s210
    %p217 = scmp.eq.s32.totalorder %s22, 1
    %p218 = por %p216, %p217
    %p219 = scmp.ne.s32.totalorder %s210, %s211
    %p220 = scmp.eq.s32.totalorder %s22, 0
    %p221 = por %p219, %p220
    %p222 = scmp.ne.s32.totalorder %s210, %s211
    %p223 = scmp.eq.s32.totalorder %s23, 1
    %p224 = por %p222, %p223
    %p226 = scmp.ne.s32.totalorder %s211, %s225
    %p227 = scmp.eq.s32.totalorder %s23, 0
    %p228 = por %p226, %p227
    %s230 = sadd.s32 %s229, 1
    %p233 = scmp.eq.s32.totalorder %s17, 1
    %p234 = scmp.ne.s32.totalorder %s229, %s231
    %p235 = scmp.eq.s32.totalorder %s17, 0
    %p236 = por %p234, %p235
    %p237 = scmp.ne.s32.totalorder %s229, %s231
    %p238 = scmp.eq.s32.totalorder %s22, 1
    %p239 = por %p237, %p238
    %p240 = scmp.ne.s32.totalorder %s231, %s232
    %p241 = scmp.eq.s32.totalorder %s22, 0
    %p242 = por %p240, %p241
    %p243 = scmp.ne.s32.totalorder %s231, %s232
    %p244 = scmp.eq.s32.totalorder %s23, 1
    %p245 = por %p243, %p244
    %p247 = scmp.ne.s32.totalorder %s232, %s246
    %p248 = scmp.eq.s32.totalorder %s23, 0
    %p249 = por %p247, %p248
    %s251 = sadd.s32 %s250, 1
    %p254 = scmp.eq.s32.totalorder %s17, 1
    %p255 = scmp.ne.s32.totalorder %s250, %s252
    %p256 = scmp.eq.s32.totalorder %s17, 0
    %p257 = por %p255, %p256
    %p258 = scmp.ne.s32.totalorder %s250, %s252
    %p259 = scmp.eq.s32.totalorder %s22, 1
    %p260 = por %p258, %p259
    %p261 = scmp.ne.s32.totalorder %s252, %s253
    %p262 = scmp.eq.s32.totalorder %s22, 0
    %p263 = por %p261, %p262
    %p264 = scmp.ne.s32.totalorder %s252, %s253
    %p265 = scmp.eq.s32.totalorder %s23, 1
    %p266 = por %p264, %p265
    %p268 = scmp.ne.s32.totalorder %s253, %s267
    %p269 = scmp.eq.s32.totalorder %s23, 0
    %p270 = por %p268, %p269
    %s271 = ssub.s32 %s17, %s24
    %p272 = scmp.eq.s32.totalorder %s271, 0
    %s274 = sadd.s32 %s273, 1
    %s275 = scalar_select %p272, %s273, %s274
    %p278 = pneg %p272
    %p279 = scmp.eq.s32.totalorder %s17, 1
    %p280 = por %p278, %p279
    %p281 = scmp.ne.s32.totalorder %s273, %s276
    %p282 = scmp.eq.s32.totalorder %s17, 0
    %p283 = por %p281, %p282
    %p284 = scmp.ne.s32.totalorder %s273, %s276
    %p285 = scmp.eq.s32.totalorder %s22, 1
    %p286 = por %p284, %p285
    %p287 = scmp.ne.s32.totalorder %s276, %s277
    %p288 = scmp.eq.s32.totalorder %s22, 0
    %p289 = por %p287, %p288
    %p290 = scmp.ne.s32.totalorder %s276, %s277
    %p291 = scmp.eq.s32.totalorder %s23, 1
    %p292 = por %p290, %p291
    %p294 = scmp.ne.s32.totalorder %s277, %s293
    %p295 = scmp.eq.s32.totalorder %s23, 0
    %p296 = por %p294, %p295
    %p297 = scmp.le.s32.totalorder 1, %s17
    %p298 = scmp.lt.s32.totalorder %s17, 3
    %p299 = pnand %p297, %p298
    %p300 = pneg %p299
    // Predicated region
    $region9: #{_lambda_.15} parent=5 // pred_check
      _
    $region10: #{_lambda_.15} parent=5 // pred_check_branch
      %302 = sbr.rel (%p299) target = $region12
    $region11: #{_lambda_.15} parent=5 // pred_region
      %s303 = ssub.s32 %s17, 1
      // Predicated region
      $region13: #{_lambda_.15} parent=11 // pred_check
        %p304 = pneg %p116
      $region14: #{_lambda_.15} parent=11 // pred_check_branch
        %306 = sbr.rel (%p304) target = $region16
      $region15: #{_lambda_.15} parent=11 // pred_region
        _
      $region16: #{_lambda_.15} parent=11 // pred_fallthru
        _
      // Predicated region
      $region17: #{_lambda_.15} parent=11 // pred_check
        %p307 = pneg %p137
      $region18: #{_lambda_.15} parent=11 // pred_check_branch
        %309 = sbr.rel (%p307) target = $region20
      $region19: #{_lambda_.15} parent=11 // pred_region
        _
      $region20: #{_lambda_.15} parent=11 // pred_fallthru
        _
      // Predicated region
      $region21: #{_lambda_.15} parent=11 // pred_check
        %p310 = pneg %p158
      $region22: #{_lambda_.15} parent=11 // pred_check_branch
        %312 = sbr.rel (%p310) target = $region24
      $region23: #{_lambda_.15} parent=11 // pred_region
        _
      $region24: #{_lambda_.15} parent=11 // pred_fallthru
        _
      // Predicated region
      $region25: #{_lambda_.15} parent=11 // pred_check
        %p313 = pneg %p179
      $region26: #{_lambda_.15} parent=11 // pred_check_branch
        %315 = sbr.rel (%p313) target = $region28
      $region27: #{_lambda_.15} parent=11 // pred_region
        _
      $region28: #{_lambda_.15} parent=11 // pred_fallthru
        _
      // Predicated region
      $region29: #{_lambda_.15} parent=11 // pred_check
        %p316 = pneg %p200
      $region30: #{_lambda_.15} parent=11 // pred_check_branch
        %318 = sbr.rel (%p316) target = $region32
      $region31: #{_lambda_.15} parent=11 // pred_region
        _
      $region32: #{_lambda_.15} parent=11 // pred_fallthru
        _
      // Predicated region
      $region33: #{_lambda_.15} parent=11 // pred_check
        %p319 = pneg %p221
      $region34: #{_lambda_.15} parent=11 // pred_check_branch
        %321 = sbr.rel (%p319) target = $region36
      $region35: #{_lambda_.15} parent=11 // pred_region
        _
      $region36: #{_lambda_.15} parent=11 // pred_fallthru
        _
      // Predicated region
      $region37: #{_lambda_.15} parent=11 // pred_check
        %p322 = pneg %p242
      $region38: #{_lambda_.15} parent=11 // pred_check_branch
        %324 = sbr.rel (%p322) target = $region40
      $region39: #{_lambda_.15} parent=11 // pred_region
        _
      $region40: #{_lambda_.15} parent=11 // pred_fallthru
        _
      // Predicated region
      $region41: #{_lambda_.15} parent=11 // pred_check
        %p325 = pneg %p263
      $region42: #{_lambda_.15} parent=11 // pred_check_branch
        %327 = sbr.rel (%p325) target = $region44
      $region43: #{_lambda_.15} parent=11 // pred_region
        _
      $region44: #{_lambda_.15} parent=11 // pred_fallthru
        _
    $region12: #{_lambda_.15} parent=5 // pred_fallthru
      _
    %p328 = scmp.lt.s32.totalorder %s17, 2
    // Predicated region
    $region45: #{_lambda_.15} parent=5 // pred_check
      %p329 = pneg %p328
    $region46: #{_lambda_.15} parent=5 // pred_check_branch
      %331 = sbr.rel (%p329) target = $region48
    $region47: #{_lambda_.15} parent=5 // pred_region
      // Predicated region
      $region49: #{_lambda_.15} parent=47 // pred_check
        %p332 = pneg %p37
      $region50: #{_lambda_.15} parent=47 // pred_check_branch
        %334 = sbr.rel (%p332) target = $region52
      $region51: #{_lambda_.15} parent=47 // pred_region
        %p335 = scmp.lt.s32.totalorder %s17, 1
        %s336 = scalar_select %p335, %s17, 1
        %s337 = smul.addr %s336, 8
        %s338 = scalar_lea.vmem %s0, %s337
      $region52: #{_lambda_.15} parent=47 // pred_fallthru
        _
      // Predicated region
      $region53: #{_lambda_.15} parent=47 // pred_check
        %p339 = pneg %p63
      $region54: #{_lambda_.15} parent=47 // pred_check_branch
        %341 = sbr.rel (%p339) target = $region56
      $region55: #{_lambda_.15} parent=47 // pred_region
        %p342 = scmp.lt.s32.totalorder %s17, 1
        %s343 = scalar_select %p342, %s17, 1
        %s344 = smul.addr %s343, 8
        %s345 = scalar_lea.vmem %s1, %s344
      $region56: #{_lambda_.15} parent=47 // pred_fallthru
        _
      // Predicated region
      $region57: #{_lambda_.15} parent=47 // pred_check
        %p346 = pneg %p89
      $region58: #{_lambda_.15} parent=47 // pred_check_branch
        %348 = sbr.rel (%p346) target = $region60
      $region59: #{_lambda_.15} parent=47 // pred_region
        %p349 = scmp.lt.s32.totalorder %s17, 1
        %s350 = scalar_select %p349, %s17, 1
        %s351 = smul.addr %s350, 8
        %s352 = scalar_lea.vmem %s2, %s351
      $region60: #{_lambda_.15} parent=47 // pred_fallthru
        _
    $region48: #{_lambda_.15} parent=5 // pred_fallthru
      _
    %p353 = scmp.le.s32.totalorder 1, %s17
    %p354 = scmp.lt.s32.totalorder %s17, 3
    %p355 = pnand %p353, %p354
    %p356 = pneg %p355
    // Predicated region
    $region61: #{_lambda_.15} parent=5 // pred_check
      _
    $region62: #{_lambda_.15} parent=5 // pred_check_branch
      %358 = sbr.rel (%p355) target = $region64
    $region63: #{_lambda_.15} parent=5 // pred_region
      %s359 = ssub.s32 %s17, 1
      %p360 = scmp.lt.s32.totalorder %s22, 1
      %s361 = scalar_select %p360, %s22, 1
      %s362 = smul.addr %s361, 8
      %s363 = scalar_lea.vmem %s0, %s362
      %p364 = pneg %p43
      %p365 = pneg %p40
      %p366 = scmp.lt.s32.totalorder %s22, 1
      %s367 = scalar_select %p366, %s22, 1
      %s368 = smul.addr %s367, 8
      %s369 = scalar_lea.vmem %s1, %s368
      %p370 = pneg %p69
      %p371 = pneg %p66
      %p372 = scmp.lt.s32.totalorder %s22, 1
      %s373 = scalar_select %p372, %s22, 1
      %s374 = smul.addr %s373, 8
      %s375 = scalar_lea.vmem %s2, %s374
      %p376 = pneg %p95
      %p377 = pneg %p92
      %p378 = pneg %p116
      %p379 = pneg %p113
      %p380 = pneg %p137
      %p381 = pneg %p134
      %p382 = pneg %p158
      %p383 = pneg %p155
      %p384 = pneg %p179
      %p385 = pneg %p176
      %p386 = pneg %p200
      %p387 = pneg %p197
      %p388 = pneg %p221
      %p389 = pneg %p218
      %p390 = pneg %p242
      %p391 = pneg %p239
      %p392 = pneg %p263
      %p393 = pneg %p260
      %p394 = pneg %p289
      %p395 = pneg %p286
      %p396 = scmp.lt.s32.totalorder %s22, 1
      %s397 = scalar_select %p396, %s22, 1
      %s398 = smul.addr %s397, 8
      %s399 = scalar_lea.vmem %s11, %s398
      %p400 = scmp.lt.s32.totalorder %s22, 1
      %s401 = scalar_select %p400, %s22, 1
      %s402 = smul.addr %s401, 8
      %s403 = scalar_lea.vmem %s0, %s402
      %p404 = scmp.lt.s32.totalorder %s22, 1
      %s405 = scalar_select %p404, %s22, 1
      %s406 = smul.addr %s405, 8
      %s407 = scalar_lea.vmem %s1, %s406
      %p408 = scmp.lt.s32.totalorder %s22, 1
      %s409 = scalar_select %p408, %s22, 1
      %s410 = smul.addr %s409, 8
      %s411 = scalar_lea.vmem %s2, %s410
      %p412 = scmp.lt.s32.totalorder %s22, 1
      %s413 = scalar_select %p412, %s22, 1
      %s414 = smul.addr %s413, 8
      %s415 = scalar_lea.vmem %s11, %s414
      %v417 = vld [vmem:[%s403] sm:$0xff]
      %v418 = vld [vmem:[%s407] sm:$0xff]
      %v419 = vld [vmem:[%s411] sm:$0xff]
      %v420 = vpack.c.bf16 %v417, %v417
      %v421 = vld [vmem:[%s3] sm:$0xf]
      %v422 = vld [vmem:[%s3 + $0x4] sm:$0xf]
      %v423 = vld [vmem:[%s3 + $0x8] sm:$0xf]
      %v424 = vld [vmem:[%s3 + $0xc] sm:$0xf]
      %v425 = vld [vmem:[%s4] sm:$0x1]
      %v427 = vlaneseq
      %v428 = vshrl.u32 %v427, 7
      %v429 = vsub.s32 0, %v428
      %v430 = vrot.slane %v425, %v429
      %v436 = vunpack.c.l.b16 %v421
      %v437 = vunpack.c.l.b16 %v422
      %v438 = vunpack.c.l.b16 %v423
      %v439 = vunpack.c.l.b16 %v424
      %v440 = vpack.c.b16 %v437, %v436
      %v441 = vpack.c.b16 %v439, %v438
      %vm444 = vcmask 261120
      %v446 = vsel %vm444, %v420, 0
      %448 = vmatprep.subr.bf16.mxu0 0
      %449 = vmatpush1.bf16.msra.mxu0 0
      %450 = vmatprep.subr.bf16.mxu0 0
      %451 = vmatpush1.bf16.msra.mxu0 0
      %452 = vmatprep.subr.bf16.mxu0 0
      %453 = vmatpush1.bf16.msra.mxu0 0
      %454 = vmatprep.subr.bf16.mxu0 0
      %455 = vmatpush1.bf16.msra.mxu0 0
      %456 = vmatprep.subr.bf16.mxu0 0
      %457 = vmatpush1.bf16.msra.mxu0 0
      %458 = vmatprep.subr.bf16.mxu0 0
      %459 = vmatpush1.bf16.msra.mxu0 0
      %460 = vmatprep.subr.bf16.mxu0 0
      %461 = vmatpush1.bf16.msra.mxu0 %v441
      %462 = vmatprep.subr.bf16.mxu0 0
      %463 = vmatpush1.bf16.msra.mxu0 %v440
      %464 = vmatprep.subr.bf16.mxu0 0
      %465 = vmatpush2.bf16.msra.mxu0 0
      %466 = vmatprep.subr.bf16.mxu0 0
      %467 = vmatpush2.bf16.msra.mxu0 0
      %468 = vmatprep.subr.bf16.mxu0 0
      %469 = vmatpush2.bf16.msra.mxu0 0
      %470 = vmatprep.subr.bf16.mxu0 0
      %471 = vmatpush2.bf16.msra.mxu0 0
      %472 = vmatprep.subr.bf16.mxu0 0
      %473 = vmatpush2.bf16.msra.mxu0 0
      %474 = vmatprep.subr.bf16.mxu0 0
      %475 = vmatpush2.bf16.msra.mxu0 0
      %476 = vmatprep.subr.bf16.mxu0 0
      %477 = vmatpush2.bf16.msra.mxu0 0
      %478 = vmatprep.subr.bf16.mxu0 0
      %479 = vmatpush2.bf16.msra.mxu0 0
      %480 = vmatprep.mubr.bf16.mxu0 0
      %481 = vmatmul.mubr.bf16.gmra.mxu0 %v446
      %v482 = vpop.f32.mrf.mxu0
      %v483 = vadd.f32 %v430, %v482
      %v484 = vpop.f32.mrf.mxu0
      %v485 = vpop.f32.mrf.mxu0
      %v486 = vpop.f32.mrf.mxu0
      %487 = vdwg.mxu0
      %v488 = vpack.c.bf16 %v418, %v418
      %v489 = vld [vmem:[%s5] sm:$0xf]
      %v490 = vld [vmem:[%s5 + $0x4] sm:$0xf]
      %v491 = vld [vmem:[%s5 + $0x8] sm:$0xf]
      %v492 = vld [vmem:[%s5 + $0xc] sm:$0xf]
      %v493 = vld [vmem:[%s6] sm:$0x1]
      %v495 = vlaneseq
      %v496 = vshrl.u32 %v495, 7
      %v497 = vsub.s32 0, %v496
      %v498 = vrot.slane %v493, %v497
      %v504 = vunpack.c.l.b16 %v489
      %v505 = vunpack.c.l.b16 %v490
      %v506 = vunpack.c.l.b16 %v491
      %v507 = vunpack.c.l.b16 %v492
      %v508 = vpack.c.b16 %v505, %v504
      %v509 = vpack.c.b16 %v507, %v506
      %v513 = vsel %vm444, %v488, 0
      %515 = vmatprep.subr.bf16.mxu0 0
      %516 = vmatpush1.bf16.msra.mxu0 0
      %517 = vmatprep.subr.bf16.mxu0 0
      %518 = vmatpush1.bf16.msra.mxu0 0
      %519 = vmatprep.subr.bf16.mxu0 0
      %520 = vmatpush1.bf16.msra.mxu0 0
      %521 = vmatprep.subr.bf16.mxu0 0
      %522 = vmatpush1.bf16.msra.mxu0 0
      %523 = vmatprep.subr.bf16.mxu0 0
      %524 = vmatpush1.bf16.msra.mxu0 0
      %525 = vmatprep.subr.bf16.mxu0 0
      %526 = vmatpush1.bf16.msra.mxu0 0
      %527 = vmatprep.subr.bf16.mxu0 0
      %528 = vmatpush1.bf16.msra.mxu0 %v509
      %529 = vmatprep.subr.bf16.mxu0 0
      %530 = vmatpush1.bf16.msra.mxu0 %v508
      %531 = vmatprep.subr.bf16.mxu0 0
      %532 = vmatpush2.bf16.msra.mxu0 0
      %533 = vmatprep.subr.bf16.mxu0 0
      %534 = vmatpush2.bf16.msra.mxu0 0
      %535 = vmatprep.subr.bf16.mxu0 0
      %536 = vmatpush2.bf16.msra.mxu0 0
      %537 = vmatprep.subr.bf16.mxu0 0
      %538 = vmatpush2.bf16.msra.mxu0 0
      %539 = vmatprep.subr.bf16.mxu0 0
      %540 = vmatpush2.bf16.msra.mxu0 0
      %541 = vmatprep.subr.bf16.mxu0 0
      %542 = vmatpush2.bf16.msra.mxu0 0
      %543 = vmatprep.subr.bf16.mxu0 0
      %544 = vmatpush2.bf16.msra.mxu0 0
      %545 = vmatprep.subr.bf16.mxu0 0
      %546 = vmatpush2.bf16.msra.mxu0 0
      %547 = vmatprep.mubr.bf16.mxu0 0
      %548 = vmatmul.mubr.bf16.gmra.mxu0 %v513
      %v549 = vpop.f32.mrf.mxu0
      %v550 = vadd.f32 %v498, %v549
      %v551 = vpop.f32.mrf.mxu0
      %v552 = vpop.f32.mrf.mxu0
      %v553 = vpop.f32.mrf.mxu0
      %554 = vdwg.mxu0
      %v555 = vmul.f32 %v483, 0.35355338
      %v556 = vpack.c.bf16 %v555, %v555
      %557 = vxpose.xlu0.b32.start [1/16] %v550, 128
      %558 = vxpose.xlu0.b32.cont [2/16] 0.0, 128
      %559 = vxpose.xlu0.b32.cont [3/16] 0.0, 128
      %560 = vxpose.xlu0.b32.cont [4/16] 0.0, 128
      %561 = vxpose.xlu0.b32.cont [5/16] 0.0, 128
      %562 = vxpose.xlu0.b32.cont [6/16] 0.0, 128
      %563 = vxpose.xlu0.b32.cont [7/16] 0.0, 128
      %564 = vxpose.xlu0.b32.cont [8/16] 0.0, 128
      %565 = vxpose.xlu0.b32.cont [9/16] 0.0, 128
      %566 = vxpose.xlu0.b32.cont [10/16] 0.0, 128
      %567 = vxpose.xlu0.b32.cont [11/16] 0.0, 128
      %568 = vxpose.xlu0.b32.cont [12/16] 0.0, 128
      %569 = vxpose.xlu0.b32.cont [13/16] 0.0, 128
      %570 = vxpose.xlu0.b32.cont [14/16] 0.0, 128
      %571 = vxpose.xlu0.b32.cont [15/16] 0.0, 128
      %572 = vxpose.xlu0.b32.end [16/16] 0.0, 128
      %v573 = vpop.trf.xlu0
      %v574 = vpop.trf.xlu0
      %v575 = vpop.trf.xlu0
      %v576 = vpop.trf.xlu0
      %v577 = vpop.trf.xlu0
      %v578 = vpop.trf.xlu0
      %v579 = vpop.trf.xlu0
      %v580 = vpop.trf.xlu0
      %v581 = vpop.trf.xlu0
      %v582 = vpop.trf.xlu0
      %v583 = vpop.trf.xlu0
      %v584 = vpop.trf.xlu0
      %v585 = vpop.trf.xlu0
      %v586 = vpop.trf.xlu0
      %v587 = vpop.trf.xlu0
      %v588 = vpop.trf.xlu0
      %v589 = vpack.c.bf16 %v573, %v573
      %v590 = vpack.c.bf16 %v550, %v550
      %vm591 = vcmask 64512
      %v593 = vsel %vm591, %v556, 0
      %vm595 = vcmask 1043456
      %v597 = vsel %vm595, %v589, 0
      %599 = vmatprep.subr.bf16.mxu0 0
      %600 = vmatpush1.bf16.msra.mxu0 0
      %601 = vmatprep.subr.bf16.mxu0 0
      %602 = vmatpush1.bf16.msra.mxu0 0
      %603 = vmatprep.subr.bf16.mxu0 0
      %604 = vmatpush1.bf16.msra.mxu0 0
      %605 = vmatprep.subr.bf16.mxu0 0
      %606 = vmatpush1.bf16.msra.mxu0 0
      %607 = vmatprep.subr.bf16.mxu0 0
      %608 = vmatpush1.bf16.msra.mxu0 0
      %609 = vmatprep.subr.bf16.mxu0 0
      %610 = vmatpush1.bf16.msra.mxu0 0
      %611 = vmatprep.subr.bf16.mxu0 0
      %612 = vmatpush1.bf16.msra.mxu0 0
      %613 = vmatprep.subr.bf16.mxu0 0
      %614 = vmatpush1.bf16.msra.mxu0 %v597
      %615 = vmatprep.subr.bf16.mxu0 0
      %616 = vmatpush2.bf16.msra.mxu0 0
      %617 = vmatprep.subr.bf16.mxu0 0
      %618 = vmatpush2.bf16.msra.mxu0 0
      %619 = vmatprep.subr.bf16.mxu0 0
      %620 = vmatpush2.bf16.msra.mxu0 0
      %621 = vmatprep.subr.bf16.mxu0 0
      %622 = vmatpush2.bf16.msra.mxu0 0
      %623 = vmatprep.subr.bf16.mxu0 0
      %624 = vmatpush2.bf16.msra.mxu0 0
      %625 = vmatprep.subr.bf16.mxu0 0
      %626 = vmatpush2.bf16.msra.mxu0 0
      %627 = vmatprep.subr.bf16.mxu0 0
      %628 = vmatpush2.bf16.msra.mxu0 0
      %629 = vmatprep.subr.bf16.mxu0 0
      %630 = vmatpush2.bf16.msra.mxu0 0
      %631 = vmatprep.mubr.bf16.mxu0 0
      %632 = vmatmul.mubr.bf16.gmra.mxu0 %v593
      %v633 = vpop.f32.mrf.mxu0
      %v634 = vadd.f32 0.0, %v633
      %v635 = vpop.f32.mrf.mxu0
      %v636 = vpop.f32.mrf.mxu0
      %v637 = vpop.f32.mrf.mxu0
      %638 = vdwg.mxu0
      %vm639 = vcmp.gt.f32.partialorder %v419, 0.0
      %v640 = vsel %vm639, %v634, -1e+09
      %v641 = vsel %vm591, %v640, -inf
      %642 = vmax.xlane.f32.xlu0 %v641
      %v643 = vpop.xlane.xlu0 %642
      %v644 = vsub.f32 %v640, %v643
      %v645 = vmul.f32 %v644, 1.442695
      %v646 = vpow.pop %v645
      %v647 = vsel %vm591, %v646, 0.0
      %648 = vadd.xlane.f32.xlu0 %v647
      %v649 = vpop.xlane.xlu0 %648
      %v650 = vrcp.pop %v649
      %v651 = vmul.f32 %v646, %v650
      %v652 = vpack.c.bf16 %v651, %v651
      %654 = vrot.lane.b32.xlu0 %v590, 96
      %v655 = vpop.permute.xlu0 %654
      %v657 = vsel %vm591, %v652, 0
      %v660 = vsel %vm595, %v655, 0
      %662 = vmatprep.subr.bf16.mxu0 0
      %663 = vmatpush1.bf16.msra.mxu0 0
      %664 = vmatprep.subr.bf16.mxu0 0
      %665 = vmatpush1.bf16.msra.mxu0 0
      %666 = vmatprep.subr.bf16.mxu0 0
      %667 = vmatpush1.bf16.msra.mxu0 0
      %668 = vmatprep.subr.bf16.mxu0 0
      %669 = vmatpush1.bf16.msra.mxu0 0
      %670 = vmatprep.subr.bf16.mxu0 0
      %671 = vmatpush1.bf16.msra.mxu0 0
      %672 = vmatprep.subr.bf16.mxu0 0
      %673 = vmatpush1.bf16.msra.mxu0 0
      %674 = vmatprep.subr.bf16.mxu0 0
      %675 = vmatpush1.bf16.msra.mxu0 0
      %676 = vmatprep.subr.bf16.mxu0 0
      %677 = vmatpush1.bf16.msra.mxu0 %v660
      %678 = vmatprep.subr.bf16.mxu0 0
      %679 = vmatpush2.bf16.msra.mxu0 0
      %680 = vmatprep.subr.bf16.mxu0 0
      %681 = vmatpush2.bf16.msra.mxu0 0
      %682 = vmatprep.subr.bf16.mxu0 0
      %683 = vmatpush2.bf16.msra.mxu0 0
      %684 = vmatprep.subr.bf16.mxu0 0
      %685 = vmatpush2.bf16.msra.mxu0 0
      %686 = vmatprep.subr.bf16.mxu0 0
      %687 = vmatpush2.bf16.msra.mxu0 0
      %688 = vmatprep.subr.bf16.mxu0 0
      %689 = vmatpush2.bf16.msra.mxu0 0
      %690 = vmatprep.subr.bf16.mxu0 0
      %691 = vmatpush2.bf16.msra.mxu0 0
      %692 = vmatprep.subr.bf16.mxu0 0
      %693 = vmatpush2.bf16.msra.mxu0 0
      %694 = vmatprep.mubr.bf16.mxu0 0
      %695 = vmatmul.mubr.bf16.gmra.mxu0 %v657
      %v696 = vpop.f32.mrf.mxu0
      %v697 = vadd.f32 0.0, %v696
      %v698 = vpop.f32.mrf.mxu0
      %v699 = vpop.f32.mrf.mxu0
      %v700 = vpop.f32.mrf.mxu0
      %701 = vdwg.mxu0
      %703 = vrot.lane.b32.xlu0 %v550, 120
      %v704 = vpop.permute.xlu0 %703
      %706 = vxpose.xlu0.b32.start [1/16] %v704, 128
      %707 = vxpose.xlu0.b32.cont [2/16] 0.0, 128
      %708 = vxpose.xlu0.b32.cont [3/16] 0.0, 128
      %709 = vxpose.xlu0.b32.cont [4/16] 0.0, 128
      %710 = vxpose.xlu0.b32.cont [5/16] 0.0, 128
      %711 = vxpose.xlu0.b32.cont [6/16] 0.0, 128
      %712 = vxpose.xlu0.b32.cont [7/16] 0.0, 128
      %713 = vxpose.xlu0.b32.cont [8/16] 0.0, 128
      %714 = vxpose.xlu0.b32.cont [9/16] 0.0, 128
      %715 = vxpose.xlu0.b32.cont [10/16] 0.0, 128
      %716 = vxpose.xlu0.b32.cont [11/16] 0.0, 128
      %717 = vxpose.xlu0.b32.cont [12/16] 0.0, 128
      %718 = vxpose.xlu0.b32.cont [13/16] 0.0, 128
      %719 = vxpose.xlu0.b32.cont [14/16] 0.0, 128
      %720 = vxpose.xlu0.b32.cont [15/16] 0.0, 128
      %721 = vxpose.xlu0.b32.end [16/16] 0.0, 128
      %v722 = vpop.trf.xlu0
      %v723 = vpop.trf.xlu0
      %v724 = vpop.trf.xlu0
      %v725 = vpop.trf.xlu0
      %v726 = vpop.trf.xlu0
      %v727 = vpop.trf.xlu0
      %v728 = vpop.trf.xlu0
      %v729 = vpop.trf.xlu0
      %v730 = vpop.trf.xlu0
      %v731 = vpop.trf.xlu0
      %v732 = vpop.trf.xlu0
      %v733 = vpop.trf.xlu0
      %v734 = vpop.trf.xlu0
      %v735 = vpop.trf.xlu0
      %v736 = vpop.trf.xlu0
      %v737 = vpop.trf.xlu0
      %v738 = vpack.c.bf16 %v722, %v722
      %740 = vrot.lane.b32.xlu0 %v556, 120
      %v741 = vpop.permute.xlu0 %740
      %v743 = vsel %vm591, %v741, 0
      %v746 = vsel %vm595, %v738, 0
      %748 = vmatprep.subr.bf16.mxu0 0
      %749 = vmatpush1.bf16.msra.mxu0 0
      %750 = vmatprep.subr.bf16.mxu0 0
      %751 = vmatpush1.bf16.msra.mxu0 0
      %752 = vmatprep.subr.bf16.mxu0 0
      %753 = vmatpush1.bf16.msra.mxu0 0
      %754 = vmatprep.subr.bf16.mxu0 0
      %755 = vmatpush1.bf16.msra.mxu0 0
      %756 = vmatprep.subr.bf16.mxu0 0
      %757 = vmatpush1.bf16.msra.mxu0 0
      %758 = vmatprep.subr.bf16.mxu0 0
      %759 = vmatpush1.bf16.msra.mxu0 0
      %760 = vmatprep.subr.bf16.mxu0 0
      %761 = vmatpush1.bf16.msra.mxu0 0
      %762 = vmatprep.subr.bf16.mxu0 0
      %763 = vmatpush1.bf16.msra.mxu0 %v746
      %764 = vmatprep.subr.bf16.mxu0 0
      %765 = vmatpush2.bf16.msra.mxu0 0
      %766 = vmatprep.subr.bf16.mxu0 0
      %767 = vmatpush2.bf16.msra.mxu0 0
      %768 = vmatprep.subr.bf16.mxu0 0
      %769 = vmatpush2.bf16.msra.mxu0 0
      %770 = vmatprep.subr.bf16.mxu0 0
      %771 = vmatpush2.bf16.msra.mxu0 0
      %772 = vmatprep.subr.bf16.mxu0 0
      %773 = vmatpush2.bf16.msra.mxu0 0
      %774 = vmatprep.subr.bf16.mxu0 0
      %775 = vmatpush2.bf16.msra.mxu0 0
      %776 = vmatprep.subr.bf16.mxu0 0
      %777 = vmatpush2.bf16.msra.mxu0 0
      %778 = vmatprep.subr.bf16.mxu0 0
      %779 = vmatpush2.bf16.msra.mxu0 0
      %780 = vmatprep.mubr.bf16.mxu0 0
      %781 = vmatmul.mubr.bf16.gmra.mxu0 %v743
      %v782 = vpop.f32.mrf.mxu0
      %v783 = vadd.f32 0.0, %v782
      %v784 = vpop.f32.mrf.mxu0
      %v785 = vpop.f32.mrf.mxu0
      %v786 = vpop.f32.mrf.mxu0
      %787 = vdwg.mxu0
      %v788 = vsel %vm639, %v783, -1e+09
      %v789 = vsel %vm591, %v788, -inf
      %790 = vmax.xlane.f32.xlu0 %v789
      %v791 = vpop.xlane.xlu0 %790
      %v792 = vsub.f32 %v788, %v791
      %v793 = vmul.f32 %v792, 1.442695
      %v794 = vpow.pop %v793
      %v795 = vsel %vm591, %v794, 0.0
      %796 = vadd.xlane.f32.xlu0 %v795
      %v797 = vpop.xlane.xlu0 %796
      %v798 = vrcp.pop %v797
      %v799 = vmul.f32 %v794, %v798
      %v800 = vpack.c.bf16 %v799, %v799
      %801 = vrot.lane.b32.xlu0 %v590, 88
      %v802 = vpop.permute.xlu0 %801
      %v804 = vsel %vm591, %v800, 0
      %v807 = vsel %vm595, %v802, 0
      %809 = vmatprep.subr.bf16.mxu0 0
      %810 = vmatpush1.bf16.msra.mxu0 0
      %811 = vmatprep.subr.bf16.mxu0 0
      %812 = vmatpush1.bf16.msra.mxu0 0
      %813 = vmatprep.subr.bf16.mxu0 0
      %814 = vmatpush1.bf16.msra.mxu0 0
      %815 = vmatprep.subr.bf16.mxu0 0
      %816 = vmatpush1.bf16.msra.mxu0 0
      %817 = vmatprep.subr.bf16.mxu0 0
      %818 = vmatpush1.bf16.msra.mxu0 0
      %819 = vmatprep.subr.bf16.mxu0 0
      %820 = vmatpush1.bf16.msra.mxu0 0
      %821 = vmatprep.subr.bf16.mxu0 0
      %822 = vmatpush1.bf16.msra.mxu0 0
      %823 = vmatprep.subr.bf16.mxu0 0
      %824 = vmatpush1.bf16.msra.mxu0 %v807
      %825 = vmatprep.subr.bf16.mxu0 0
      %826 = vmatpush2.bf16.msra.mxu0 0
      %827 = vmatprep.subr.bf16.mxu0 0
      %828 = vmatpush2.bf16.msra.mxu0 0
      %829 = vmatprep.subr.bf16.mxu0 0
      %830 = vmatpush2.bf16.msra.mxu0 0
      %831 = vmatprep.subr.bf16.mxu0 0
      %832 = vmatpush2.bf16.msra.mxu0 0
      %833 = vmatprep.subr.bf16.mxu0 0
      %834 = vmatpush2.bf16.msra.mxu0 0
      %835 = vmatprep.subr.bf16.mxu0 0
      %836 = vmatpush2.bf16.msra.mxu0 0
      %837 = vmatprep.subr.bf16.mxu0 0
      %838 = vmatpush2.bf16.msra.mxu0 0
      %839 = vmatprep.subr.bf16.mxu0 0
      %840 = vmatpush2.bf16.msra.mxu0 0
      %841 = vmatprep.mubr.bf16.mxu0 0
      %842 = vmatmul.mubr.bf16.gmra.mxu0 %v804
      %v843 = vpop.f32.mrf.mxu0
      %v844 = vadd.f32 0.0, %v843
      %v845 = vpop.f32.mrf.mxu0
      %v846 = vpop.f32.mrf.mxu0
      %v847 = vpop.f32.mrf.mxu0
      %848 = vdwg.mxu0
      %849 = vrot.lane.b32.xlu0 %v550, 112
      %v850 = vpop.permute.xlu0 %849
      %852 = vxpose.xlu0.b32.start [1/16] %v850, 128
      %853 = vxpose.xlu0.b32.cont [2/16] 0.0, 128
      %854 = vxpose.xlu0.b32.cont [3/16] 0.0, 128
      %855 = vxpose.xlu0.b32.cont [4/16] 0.0, 128
      %856 = vxpose.xlu0.b32.cont [5/16] 0.0, 128
      %857 = vxpose.xlu0.b32.cont [6/16] 0.0, 128
      %858 = vxpose.xlu0.b32.cont [7/16] 0.0, 128
      %859 = vxpose.xlu0.b32.cont [8/16] 0.0, 128
      %860 = vxpose.xlu0.b32.cont [9/16] 0.0, 128
      %861 = vxpose.xlu0.b32.cont [10/16] 0.0, 128
      %862 = vxpose.xlu0.b32.cont [11/16] 0.0, 128
      %863 = vxpose.xlu0.b32.cont [12/16] 0.0, 128
      %864 = vxpose.xlu0.b32.cont [13/16] 0.0, 128
      %865 = vxpose.xlu0.b32.cont [14/16] 0.0, 128
      %866 = vxpose.xlu0.b32.cont [15/16] 0.0, 128
      %867 = vxpose.xlu0.b32.end [16/16] 0.0, 128
      %v868 = vpop.trf.xlu0
      %v869 = vpop.trf.xlu0
      %v870 = vpop.trf.xlu0
      %v871 = vpop.trf.xlu0
      %v872 = vpop.trf.xlu0
      %v873 = vpop.trf.xlu0
      %v874 = vpop.trf.xlu0
      %v875 = vpop.trf.xlu0
      %v876 = vpop.trf.xlu0
      %v877 = vpop.trf.xlu0
      %v878 = vpop.trf.xlu0
      %v879 = vpop.trf.xlu0
      %v880 = vpop.trf.xlu0
      %v881 = vpop.trf.xlu0
      %v882 = vpop.trf.xlu0
      %v883 = vpop.trf.xlu0
      %v884 = vpack.c.bf16 %v868, %v868
      %885 = vrot.lane.b32.xlu0 %v556, 112
      %v886 = vpop.permute.xlu0 %885
      %v888 = vsel %vm591, %v886, 0
      %v891 = vsel %vm595, %v884, 0
      %893 = vmatprep.subr.bf16.mxu0 0
      %894 = vmatpush1.bf16.msra.mxu0 0
      %895 = vmatprep.subr.bf16.mxu0 0
      %896 = vmatpush1.bf16.msra.mxu0 0
      %897 = vmatprep.subr.bf16.mxu0 0
      %898 = vmatpush1.bf16.msra.mxu0 0
      %899 = vmatprep.subr.bf16.mxu0 0
      %900 = vmatpush1.bf16.msra.mxu0 0
      %901 = vmatprep.subr.bf16.mxu0 0
      %902 = vmatpush1.bf16.msra.mxu0 0
      %903 = vmatprep.subr.bf16.mxu0 0
      %904 = vmatpush1.bf16.msra.mxu0 0
      %905 = vmatprep.subr.bf16.mxu0 0
      %906 = vmatpush1.bf16.msra.mxu0 0
      %907 = vmatprep.subr.bf16.mxu0 0
      %908 = vmatpush1.bf16.msra.mxu0 %v891
      %909 = vmatprep.subr.bf16.mxu0 0
      %910 = vmatpush2.bf16.msra.mxu0 0
      %911 = vmatprep.subr.bf16.mxu0 0
      %912 = vmatpush2.bf16.msra.mxu0 0
      %913 = vmatprep.subr.bf16.mxu0 0
      %914 = vmatpush2.bf16.msra.mxu0 0
      %915 = vmatprep.subr.bf16.mxu0 0
      %916 = vmatpush2.bf16.msra.mxu0 0
      %917 = vmatprep.subr.bf16.mxu0 0
      %918 = vmatpush2.bf16.msra.mxu0 0
      %919 = vmatprep.subr.bf16.mxu0 0
      %920 = vmatpush2.bf16.msra.mxu0 0
      %921 = vmatprep.subr.bf16.mxu0 0
      %922 = vmatpush2.bf16.msra.mxu0 0
      %923 = vmatprep.subr.bf16.mxu0 0
      %924 = vmatpush2.bf16.msra.mxu0 0
      %925 = vmatprep.mubr.bf16.mxu0 0
      %926 = vmatmul.mubr.bf16.gmra.mxu0 %v888
      %v927 = vpop.f32.mrf.mxu0
      %v928 = vadd.f32 0.0, %v927
      %v929 = vpop.f32.mrf.mxu0
      %v930 = vpop.f32.mrf.mxu0
      %v931 = vpop.f32.mrf.mxu0
      %932 = vdwg.mxu0
      %v933 = vsel %vm639, %v928, -1e+09
      %v934 = vsel %vm591, %v933, -inf
      %935 = vmax.xlane.f32.xlu0 %v934
      %v936 = vpop.xlane.xlu0 %935
      %v937 = vsub.f32 %v933, %v936
      %v938 = vmul.f32 %v937, 1.442695
      %v939 = vpow.pop %v938
      %v940 = vsel %vm591, %v939, 0.0
      %941 = vadd.xlane.f32.xlu0 %v940
      %v942 = vpop.xlane.xlu0 %941
      %v943 = vrcp.pop %v942
      %v944 = vmul.f32 %v939, %v943
      %v945 = vpack.c.bf16 %v944, %v944
      %946 = vrot.lane.b32.xlu0 %v590, 80
      %v947 = vpop.permute.xlu0 %946
      %v949 = vsel %vm591, %v945, 0
      %v952 = vsel %vm595, %v947, 0
      %954 = vmatprep.subr.bf16.mxu0 0
      %955 = vmatpush1.bf16.msra.mxu0 0
      %956 = vmatprep.subr.bf16.mxu0 0
      %957 = vmatpush1.bf16.msra.mxu0 0
      %958 = vmatprep.subr.bf16.mxu0 0
      %959 = vmatpush1.bf16.msra.mxu0 0
      %960 = vmatprep.subr.bf16.mxu0 0
      %961 = vmatpush1.bf16.msra.mxu0 0
      %962 = vmatprep.subr.bf16.mxu0 0
      %963 = vmatpush1.bf16.msra.mxu0 0
      %964 = vmatprep.subr.bf16.mxu0 0
      %965 = vmatpush1.bf16.msra.mxu0 0
      %966 = vmatprep.subr.bf16.mxu0 0
      %967 = vmatpush1.bf16.msra.mxu0 0
      %968 = vmatprep.subr.bf16.mxu0 0
      %969 = vmatpush1.bf16.msra.mxu0 %v952
      %970 = vmatprep.subr.bf16.mxu0 0
      %971 = vmatpush2.bf16.msra.mxu0 0
      %972 = vmatprep.subr.bf16.mxu0 0
      %973 = vmatpush2.bf16.msra.mxu0 0
      %974 = vmatprep.subr.bf16.mxu0 0
      %975 = vmatpush2.bf16.msra.mxu0 0
      %976 = vmatprep.subr.bf16.mxu0 0
      %977 = vmatpush2.bf16.msra.mxu0 0
      %978 = vmatprep.subr.bf16.mxu0 0
      %979 = vmatpush2.bf16.msra.mxu0 0
      %980 = vmatprep.subr.bf16.mxu0 0
      %981 = vmatpush2.bf16.msra.mxu0 0
      %982 = vmatprep.subr.bf16.mxu0 0
      %983 = vmatpush2.bf16.msra.mxu0 0
      %984 = vmatprep.subr.bf16.mxu0 0
      %985 = vmatpush2.bf16.msra.mxu0 0
      %986 = vmatprep.mubr.bf16.mxu0 0
      %987 = vmatmul.mubr.bf16.gmra.mxu0 %v949
      %v988 = vpop.f32.mrf.mxu0
      %v989 = vadd.f32 0.0, %v988
      %v990 = vpop.f32.mrf.mxu0
      %v991 = vpop.f32.mrf.mxu0
      %v992 = vpop.f32.mrf.mxu0
      %993 = vdwg.mxu0
      %994 = vrot.lane.b32.xlu0 %v550, 104
      %v995 = vpop.permute.xlu0 %994
      %997 = vxpose.xlu0.b32.start [1/16] %v995, 128
      %998 = vxpose.xlu0.b32.cont [2/16] 0.0, 128
      %999 = vxpose.xlu0.b32.cont [3/16] 0.0, 128
      %1000 = vxpose.xlu0.b32.cont [4/16] 0.0, 128
      %1001 = vxpose.xlu0.b32.cont [5/16] 0.0, 128
      %1002 = vxpose.xlu0.b32.cont [6/16] 0.0, 128
      %1003 = vxpose.xlu0.b32.cont [7/16] 0.0, 128
      %1004 = vxpose.xlu0.b32.cont [8/16] 0.0, 128
      %1005 = vxpose.xlu0.b32.cont [9/16] 0.0, 128
      %1006 = vxpose.xlu0.b32.cont [10/16] 0.0, 128
      %1007 = vxpose.xlu0.b32.cont [11/16] 0.0, 128
      %1008 = vxpose.xlu0.b32.cont [12/16] 0.0, 128
      %1009 = vxpose.xlu0.b32.cont [13/16] 0.0, 128
      %1010 = vxpose.xlu0.b32.cont [14/16] 0.0, 128
      %1011 = vxpose.xlu0.b32.cont [15/16] 0.0, 128
      %1012 = vxpose.xlu0.b32.end [16/16] 0.0, 128
      %v1013 = vpop.trf.xlu0
      %v1014 = vpop.trf.xlu0
      %v1015 = vpop.trf.xlu0
      %v1016 = vpop.trf.xlu0
      %v1017 = vpop.trf.xlu0
      %v1018 = vpop.trf.xlu0
      %v1019 = vpop.trf.xlu0
      %v1020 = vpop.trf.xlu0
      %v1021 = vpop.trf.xlu0
      %v1022 = vpop.trf.xlu0
      %v1023 = vpop.trf.xlu0
      %v1024 = vpop.trf.xlu0
      %v1025 = vpop.trf.xlu0
      %v1026 = vpop.trf.xlu0
      %v1027 = vpop.trf.xlu0
      %v1028 = vpop.trf.xlu0
      %v1029 = vpack.c.bf16 %v1013, %v1013
      %1030 = vrot.lane.b32.xlu0 %v556, 104
      %v1031 = vpop.permute.xlu0 %1030
      %v1033 = vsel %vm591, %v1031, 0
      %v1036 = vsel %vm595, %v1029, 0
      %1038 = vmatprep.subr.bf16.mxu0 0
      %1039 = vmatpush1.bf16.msra.mxu0 0
      %1040 = vmatprep.subr.bf16.mxu0 0
      %1041 = vmatpush1.bf16.msra.mxu0 0
      %1042 = vmatprep.subr.bf16.mxu0 0
      %1043 = vmatpush1.bf16.msra.mxu0 0
      %1044 = vmatprep.subr.bf16.mxu0 0
      %1045 = vmatpush1.bf16.msra.mxu0 0
      %1046 = vmatprep.subr.bf16.mxu0 0
      %1047 = vmatpush1.bf16.msra.mxu0 0
      %1048 = vmatprep.subr.bf16.mxu0 0
      %1049 = vmatpush1.bf16.msra.mxu0 0
      %1050 = vmatprep.subr.bf16.mxu0 0
      %1051 = vmatpush1.bf16.msra.mxu0 0
      %1052 = vmatprep.subr.bf16.mxu0 0
      %1053 = vmatpush1.bf16.msra.mxu0 %v1036
      %1054 = vmatprep.subr.bf16.mxu0 0
      %1055 = vmatpush2.bf16.msra.mxu0 0
      %1056 = vmatprep.subr.bf16.mxu0 0
      %1057 = vmatpush2.bf16.msra.mxu0 0
      %1058 = vmatprep.subr.bf16.mxu0 0
      %1059 = vmatpush2.bf16.msra.mxu0 0
      %1060 = vmatprep.subr.bf16.mxu0 0
      %1061 = vmatpush2.bf16.msra.mxu0 0
      %1062 = vmatprep.subr.bf16.mxu0 0
      %1063 = vmatpush2.bf16.msra.mxu0 0
      %1064 = vmatprep.subr.bf16.mxu0 0
      %1065 = vmatpush2.bf16.msra.mxu0 0
      %1066 = vmatprep.subr.bf16.mxu0 0
      %1067 = vmatpush2.bf16.msra.mxu0 0
      %1068 = vmatprep.subr.bf16.mxu0 0
      %1069 = vmatpush2.bf16.msra.mxu0 0
      %1070 = vmatprep.mubr.bf16.mxu0 0
      %1071 = vmatmul.mubr.bf16.gmra.mxu0 %v1033
      %v1072 = vpop.f32.mrf.mxu0
      %v1073 = vadd.f32 0.0, %v1072
      %v1074 = vpop.f32.mrf.mxu0
      %v1075 = vpop.f32.mrf.mxu0
      %v1076 = vpop.f32.mrf.mxu0
      %1077 = vdwg.mxu0
      %v1078 = vsel %vm639, %v1073, -1e+09
      %v1079 = vsel %vm591, %v1078, -inf
      %1080 = vmax.xlane.f32.xlu0 %v1079
      %v1081 = vpop.xlane.xlu0 %1080
      %v1082 = vsub.f32 %v1078, %v1081
      %v1083 = vmul.f32 %v1082, 1.442695
      %v1084 = vpow.pop %v1083
      %v1085 = vsel %vm591, %v1084, 0.0
      %1086 = vadd.xlane.f32.xlu0 %v1085
      %v1087 = vpop.xlane.xlu0 %1086
      %v1088 = vrcp.pop %v1087
      %v1089 = vmul.f32 %v1084, %v1088
      %v1090 = vpack.c.bf16 %v1089, %v1089
      %1091 = vrot.lane.b32.xlu0 %v590, 72
      %v1092 = vpop.permute.xlu0 %1091
      %v1094 = vsel %vm591, %v1090, 0
      %v1097 = vsel %vm595, %v1092, 0
      %1099 = vmatprep.subr.bf16.mxu0 0
      %1100 = vmatpush1.bf16.msra.mxu0 0
      %1101 = vmatprep.subr.bf16.mxu0 0
      %1102 = vmatpush1.bf16.msra.mxu0 0
      %1103 = vmatprep.subr.bf16.mxu0 0
      %1104 = vmatpush1.bf16.msra.mxu0 0
      %1105 = vmatprep.subr.bf16.mxu0 0
      %1106 = vmatpush1.bf16.msra.mxu0 0
      %1107 = vmatprep.subr.bf16.mxu0 0
      %1108 = vmatpush1.bf16.msra.mxu0 0
      %1109 = vmatprep.subr.bf16.mxu0 0
      %1110 = vmatpush1.bf16.msra.mxu0 0
      %1111 = vmatprep.subr.bf16.mxu0 0
      %1112 = vmatpush1.bf16.msra.mxu0 0
      %1113 = vmatprep.subr.bf16.mxu0 0
      %1114 = vmatpush1.bf16.msra.mxu0 %v1097
      %1115 = vmatprep.subr.bf16.mxu0 0
      %1116 = vmatpush2.bf16.msra.mxu0 0
      %1117 = vmatprep.subr.bf16.mxu0 0
      %1118 = vmatpush2.bf16.msra.mxu0 0
      %1119 = vmatprep.subr.bf16.mxu0 0
      %1120 = vmatpush2.bf16.msra.mxu0 0
      %1121 = vmatprep.subr.bf16.mxu0 0
      %1122 = vmatpush2.bf16.msra.mxu0 0
      %1123 = vmatprep.subr.bf16.mxu0 0
      %1124 = vmatpush2.bf16.msra.mxu0 0
      %1125 = vmatprep.subr.bf16.mxu0 0
      %1126 = vmatpush2.bf16.msra.mxu0 0
      %1127 = vmatprep.subr.bf16.mxu0 0
      %1128 = vmatpush2.bf16.msra.mxu0 0
      %1129 = vmatprep.subr.bf16.mxu0 0
      %1130 = vmatpush2.bf16.msra.mxu0 0
      %1131 = vmatprep.mubr.bf16.mxu0 0
      %1132 = vmatmul.mubr.bf16.gmra.mxu0 %v1094
      %v1133 = vpop.f32.mrf.mxu0
      %v1134 = vadd.f32 0.0, %v1133
      %v1135 = vpop.f32.mrf.mxu0
      %v1136 = vpop.f32.mrf.mxu0
      %v1137 = vpop.f32.mrf.mxu0
      %1138 = vdwg.mxu0
      %1140 = vrot.lane.b32.xlu0 %v844, 8
      %v1141 = vpop.permute.xlu0 %1140
      %1144 = vrot.lane.b32.xlu0 %v989, 16
      %v1145 = vpop.permute.xlu0 %1144
      %1148 = vrot.lane.b32.xlu0 %v1134, 24
      %v1149 = vpop.permute.xlu0 %1148
      %v1151 = vsel %vm591, %v697, %v1141
      %vm1152 = vcmask 130048
      %v1153 = vsel %vm1152, %v1151, %v1145
      %vm1154 = vcmask 195584
      %v1155 = vsel %vm1154, %v1153, %v1149
      %v1156 = vpack.c.bf16 %v1155, %v1155
      %v1157 = vld [vmem:[%s7] sm:$0xf]
      %v1158 = vld [vmem:[%s7 + $0x4] sm:$0xf]
      %v1159 = vld [vmem:[%s7 + $0x8] sm:$0xf]
      %v1160 = vld [vmem:[%s7 + $0xc] sm:$0xf]
      %v1161 = vld [vmem:[%s8] sm:$0x1]
      %v1163 = vlaneseq
      %v1164 = vshrl.u32 %v1163, 7
      %v1165 = vsub.s32 0, %v1164
      %v1166 = vrot.slane %v1161, %v1165
      %v1172 = vunpack.c.l.b16 %v1157
      %v1173 = vunpack.c.l.b16 %v1158
      %v1174 = vunpack.c.l.b16 %v1159
      %v1175 = vunpack.c.l.b16 %v1160
      %v1176 = vpack.c.b16 %v1173, %v1172
      %v1177 = vpack.c.b16 %v1175, %v1174
      %v1181 = vsel %vm444, %v1156, 0
      %1183 = vmatprep.subr.bf16.mxu0 0
      %1184 = vmatpush1.bf16.msra.mxu0 0
      %1185 = vmatprep.subr.bf16.mxu0 0
      %1186 = vmatpush1.bf16.msra.mxu0 0
      %1187 = vmatprep.subr.bf16.mxu0 0
      %1188 = vmatpush1.bf16.msra.mxu0 0
      %1189 = vmatprep.subr.bf16.mxu0 0
      %1190 = vmatpush1.bf16.msra.mxu0 0
      %1191 = vmatprep.subr.bf16.mxu0 0
      %1192 = vmatpush1.bf16.msra.mxu0 0
      %1193 = vmatprep.subr.bf16.mxu0 0
      %1194 = vmatpush1.bf16.msra.mxu0 0
      %1195 = vmatprep.subr.bf16.mxu0 0
      %1196 = vmatpush1.bf16.msra.mxu0 %v1177
      %1197 = vmatprep.subr.bf16.mxu0 0
      %1198 = vmatpush1.bf16.msra.mxu0 %v1176
      %1199 = vmatprep.subr.bf16.mxu0 0
      %1200 = vmatpush2.bf16.msra.mxu0 0
      %1201 = vmatprep.subr.bf16.mxu0 0
      %1202 = vmatpush2.bf16.msra.mxu0 0
      %1203 = vmatprep.subr.bf16.mxu0 0
      %1204 = vmatpush2.bf16.msra.mxu0 0
      %1205 = vmatprep.subr.bf16.mxu0 0
      %1206 = vmatpush2.bf16.msra.mxu0 0
      %1207 = vmatprep.subr.bf16.mxu0 0
      %1208 = vmatpush2.bf16.msra.mxu0 0
      %1209 = vmatprep.subr.bf16.mxu0 0
      %1210 = vmatpush2.bf16.msra.mxu0 0
      %1211 = vmatprep.subr.bf16.mxu0 0
      %1212 = vmatpush2.bf16.msra.mxu0 0
      %1213 = vmatprep.subr.bf16.mxu0 0
      %1214 = vmatpush2.bf16.msra.mxu0 0
      %1215 = vmatprep.mubr.bf16.mxu0 0
      %1216 = vmatmul.mubr.bf16.gmra.mxu0 %v1181
      %v1217 = vpop.f32.mrf.mxu0
      %v1218 = vadd.f32 %v1166, %v1217
      %v1219 = vpop.f32.mrf.mxu0
      %v1220 = vpop.f32.mrf.mxu0
      %v1221 = vpop.f32.mrf.mxu0
      %1222 = vdwg.mxu0
      %v1223 = vadd.f32 %v1218, %v417
      %v1224 = vsel %vm444, %v1223, 0.0
      %1225 = vadd.xlane.f32.xlu0 %v1224
      %v1226 = vpop.xlane.xlu0 %1225
      %v1227 = vrcp.pop 32.0
      %v1228 = vmul.f32 %v1226, %v1227
      %v1229 = vsub.f32 %v1223, %v1228
      %v1230 = vmul.f32 %v1229, %v1229
      %v1231 = vsel %vm444, %v1230, 0.0
      %1232 = vadd.xlane.f32.xlu0 %v1231
      %v1233 = vpop.xlane.xlu0 %1232
      %v1234 = vmul.f32 %v1233, %v1227
      %v1235 = vadd.f32 %v1234, 1e-12
      %v1236 = vrsqrt.pop %v1235
      %v1237 = vmul.f32 %v1229, %v1236
      %v1238 = vld [vmem:[%s9] sm:$0x1]
      %v1240 = vlaneseq
      %v1241 = vshrl.u32 %v1240, 7
      %v1242 = vsub.s32 0, %v1241
      %v1243 = vrot.slane %v1238, %v1242
      %v1245 = vmul.f32 %v1237, %v1243
      %v1246 = vld [vmem:[%s10] sm:$0x1]
      %v1248 = vlaneseq
      %v1249 = vshrl.u32 %v1248, 7
      %v1250 = vsub.s32 0, %v1249
      %v1251 = vrot.slane %v1246, %v1250
      %v1253 = vadd.f32 %v1245, %v1251
      %1254 = vst.msk [vmem:[%s415] sm:$0xff] %vm444, %v1253
      %p1255 = scmp.lt.s32.totalorder %s22, 1
      %s1256 = scalar_select %p1255, %s22, 1
      %s1257 = smul.addr %s1256, 8
      %s1258 = scalar_lea.vmem %s11, %s1257
      // Predicated region
      $region65: #{_lambda_.15} parent=63 // pred_check
        %p1259 = pneg %p286
      $region66: #{_lambda_.15} parent=63 // pred_check_branch
        %1261 = sbr.rel (%p1259) target = $region68
      $region67: #{_lambda_.15} parent=63 // pred_region
        _
      $region68: #{_lambda_.15} parent=63 // pred_fallthru
        _
    $region64: #{_lambda_.15} parent=5 // pred_fallthru
      _
    %p1262 = scmp.le.s32.totalorder 2, %s17
    // Predicated region
    $region69: #{_lambda_.15} parent=5 // pred_check
      %p1263 = pneg %p1262
    $region70: #{_lambda_.15} parent=5 // pred_check_branch
      %1265 = sbr.rel (%p1263) target = $region72
    $region71: #{_lambda_.15} parent=5 // pred_region
      %s1266 = ssub.s32 %s17, 2
      // Predicated region
      $region73: #{_lambda_.15} parent=71 // pred_check
        %p1267 = pneg %p292
      $region74: #{_lambda_.15} parent=71 // pred_check_branch
        %1269 = sbr.rel (%p1267) target = $region76
      $region75: #{_lambda_.15} parent=71 // pred_region
        %p1270 = scmp.lt.s32.totalorder %s23, 1
        %s1271 = scalar_select %p1270, %s23, 1
        %s1272 = smul.addr %s1271, 8
        %s1273 = scalar_lea.vmem %s11, %s1272
      $region76: #{_lambda_.15} parent=71 // pred_fallthru
        _
    $region72: #{_lambda_.15} parent=5 // pred_fallthru
      _
  $region6: #{_lambda_.15} parent=0 // loop_footer
    %s21 = sadd.s32 1, %s17
  $region7: #{_lambda_.15} parent=0 // loop_footer_branch
    %16 = sbr.rel target = $region3
  $region8: #{_lambda_.15} parent=0 // loop_exit
    _

</llo_original>
